<compile_context>
chip_gen: v6e
topology: v6e:2x2x1
jax: 0.10.0
libtpu: 0.0.40
codegen_flags: <defaults>
</compile_context>

<pallas_src>
import numpy as np
import jax
import jax.numpy as jnp
from jax.experimental import pallas as pl
from jax.experimental.pallas import tpu as pltpu

NUM_LABELS = 62
IMG = 8                         # input spatial size implied by fc1 = Linear(64, 512)
TAP = 9 * 32                    # 288 conv1 features per pool tap (pos-major, chan-minor)
TAP_PAD = 384                   # tap slot padded to a multiple of 128 lanes (vreg-aligned)
OUT_PAD = 128                   # lane-dense padded logit width (62 -> 128)
COMPUTE_DTYPE = jnp.bfloat16    # MXU operand dtype; accumulation stays f32


# --------------------------------------------------------------------------- #
# Fused kernel
# --------------------------------------------------------------------------- #
def fused_forward_kernel(x_ref, d1_ref, b1_ref, w2_ref, b2_ref,
                         wf1_ref, bf1_ref, wf2_ref, bf2_ref, wf3_ref, bf3_ref,
                         o_ref):
    """Whole forward pass for one batch tile, entirely in VMEM."""
    x = x_ref[...]                                   # (TB, 64) bf16, flattened 8x8 image

    # conv1 evaluated at all 4 positions of every 2x2 pool window as ONE
    # (64, 4*384) matmul; tap q occupies lanes [q*384, q*384+288).
    taps = jnp.dot(x, d1_ref[...], preferred_element_type=jnp.float32)   # (TB, 1536) f32

    # 2x2 maxpool = sequential max over the 4 lane-aligned tap slots.
    p = taps[:, 0 * TAP_PAD:1 * TAP_PAD]
    p = jnp.maximum(p, taps[:, 1 * TAP_PAD:2 * TAP_PAD])
    p = jnp.maximum(p, taps[:, 2 * TAP_PAD:3 * TAP_PAD])
    p = jnp.maximum(p, taps[:, 3 * TAP_PAD:4 * TAP_PAD])
    # bias + ReLU hoisted out of the max (bias shared across taps, ReLU monotone).
    p = jnp.maximum(p + b1_ref[...], 0.0)            # (TB, 384) f32; lanes >= 288 are 0

    # conv2 on the 3x3x32 pooled map -> 1x1x64: one K=384 matmul
    # (rows 288..383 of w2 are zero, so the padded lanes contribute nothing).
    f = jnp.dot(p.astype(COMPUTE_DTYPE), w2_ref[...],
                preferred_element_type=jnp.float32) + b2_ref[...]
    f = jnp.maximum(f, 0.0)                                          # (TB, 64)

    # TODO(synk): dropout after fc1/fc2 is identity at inference; training mode not implemented.
    h = jnp.dot(f.astype(COMPUTE_DTYPE), wf1_ref[...],
                preferred_element_type=jnp.float32) + bf1_ref[...]
    h = jnp.maximum(h, 0.0)                                          # (TB, 512)
    h = jnp.dot(h.astype(COMPUTE_DTYPE), wf2_ref[...],
                preferred_element_type=jnp.float32) + bf2_ref[...]
    h = jnp.maximum(h, 0.0)                                          # (TB, 256)
    out = jnp.dot(h.astype(COMPUTE_DTYPE), wf3_ref[...],
                  preferred_element_type=jnp.float32) + bf3_ref[...]  # (TB, 128) lane-dense
    o_ref[...] = out.astype(o_ref.dtype)


# --------------------------------------------------------------------------- #
# Wrapper
# --------------------------------------------------------------------------- #
def _full_spec(arr):
    zeros = (0,) * arr.ndim
    return pl.BlockSpec(arr.shape, lambda i, _z=zeros: _z)


def _auto_batch_tile(B, max_tile=1024):
    """Pick a batch tile: one tile for small B (no padding); otherwise aim for
    ~max_tile rows but at least 2 tiles so v7x can shard the grid across both
    TensorCores. Tiles are multiples of 8 (sublane constraint) when grid > 1."""
    if B <= 512:
        return B
    n_tiles = max(2, pl.cdiv(B, max_tile))
    tb = pl.cdiv(B, n_tiles)
    tb = pl.cdiv(tb, 8) * 8
    return min(tb, max_tile)


def forward(x_nchw, kp, *, batch_tile=None):
    """x_nchw: (B, 1, 8, 8) -> logits (B, 62)."""
    B = x_nchw.shape[0]
    x_flat = x_nchw.reshape(B, IMG * IMG).astype(COMPUTE_DTYPE)   # lane-dense (B, 64)

    tb = batch_tile if batch_tile is not None else _auto_batch_tile(B)
    tb = min(tb, B)
    b_pad = pl.cdiv(B, tb) * tb
    if b_pad != B:
        x_flat = jnp.pad(x_flat, ((0, b_pad - B), (0, 0)))

    weights = (kp["d1"], kp["b1"], kp["w2"], kp["b2"],
               kp["w_fc1"], kp["b_fc1"], kp["w_fc2"], kp["b_fc2"],
               kp["w_fc3"], kp["b_fc3"])

    # Advisory scheduling hint for XLA (overlap surrounding reshape/pad/slice).
    flops_per_row = 2 * (64 * 4 * TAP_PAD + TAP_PAD * 64
                         + 64 * 512 + 512 * 256 + 256 * OUT_PAD)
    weight_bytes = sum(int(np.prod(w.shape)) * w.dtype.itemsize for w in weights)
    cost = pl.CostEstimate(
        flops=flops_per_row * b_pad,
        transcendentals=0,
        bytes_accessed=int(b_pad * IMG * IMG * 2 + weight_bytes + b_pad * OUT_PAD * 4),
    )

    out = pl.pallas_call(
        fused_forward_kernel,
        out_shape=jax.ShapeDtypeStruct((b_pad, OUT_PAD), jnp.float32),
        grid=(b_pad // tb,),
        in_specs=[pl.BlockSpec((tb, IMG * IMG), lambda i: (i, 0))]
                 + [_full_spec(w) for w in weights],
        out_specs=pl.BlockSpec((tb, OUT_PAD), lambda i: (i, 0)),
        compiler_params=pltpu.CompilerParams(
            dimension_semantics=("parallel",),          # shards batch tiles across TCs on v7x
            vmem_limit_bytes=32 * 1024 * 1024),         # ample for TB<=1024 on every gen
        cost_estimate=cost,
    )(x_flat, *weights)

    return out[:B, :NUM_LABELS]


# --------------------------------------------------------------------------- #
# Parameters: PyTorch-convention init + conversion to kernel layout
# --------------------------------------------------------------------------- #
def init_torch_params(key, num_labels=NUM_LABELS):
    """PyTorch-convention shapes (Conv2d: (cout,cin,kh,kw); Linear: (out,in))."""
    ks = jax.random.split(key, 10)

    def uni(k, shape, fan_in):
        bound = 1.0 / np.sqrt(fan_in)
        return jax.random.uniform(k, shape, jnp.float32, -bound, bound)

    return {
        "conv1.weight": uni(ks[0], (32, 1, 3, 3), 1 * 9),
        "conv1.bias":   uni(ks[1], (32,), 1 * 9),
        "conv2.weight": uni(ks[2], (64, 32, 3, 3), 32 * 9),
        "conv2.bias":   uni(ks[3], (64,), 32 * 9),
        "fc1.weight":   uni(ks[4], (512, 64), 64),
        "fc1.bias":     uni(ks[5], (512,), 64),
        "fc2.weight":   uni(ks[6], (256, 512), 512),
        "fc2.bias":     uni(ks[7], (256,), 512),
        "fc3.weight":   uni(ks[8], (num_labels, 256), 256),
        "fc3.bias":     uni(ks[9], (num_labels,), 256),
    }


def _build_conv1_dense(w1_khkwc):
    """(3,3,32) conv1 weights -> dense (64, 4*384).

    Column q*384 + (i*3+j)*32 + c maps the flattened 8x8 input to the pre-relu
    conv1 output at spatial position (2i+di, 2j+dj), channel c, where
    q = di*2 + dj indexes the position inside the 2x2 maxpool window.
    Columns [q*384+288, (q+1)*384) are zero padding (vreg alignment)."""
    D = np.zeros((IMG * IMG, 4 * TAP_PAD), np.float32)
    for di in range(2):
        for dj in range(2):
            q = di * 2 + dj
            base = q * TAP_PAD
            for i in range(3):
                for j in range(3):
                    n0 = base + (i * 3 + j) * 32
                    for kh in range(3):
                        for kw in range(3):
                            pix = (2 * i + di + kh) * IMG + (2 * j + dj + kw)
                            D[pix, n0:n0 + 32] += w1_khkwc[kh, kw, :]
    return D


def prepare_kernel_params(tp):
    """Convert PyTorch-layout params into the fused-kernel layout (done once)."""
    w1 = np.asarray(tp["conv1.weight"])[:, 0]                       # (32, 3, 3)
    d1 = _build_conv1_dense(np.transpose(w1, (1, 2, 0)))            # (64, 1536)
    b1 = np.zeros((1, TAP_PAD), np.float32)                         # padded lanes stay 0
    b1[0, :TAP] = np.tile(np.asarray(tp["conv1.bias"]), 9)          # pos-major, chan-minor

    # conv2 weights: row r = (kh*3+kw)*32 + cin; rows >= 288 are zero padding.
    w2 = np.zeros((TAP_PAD, 64), np.float32)
    w2[:TAP] = np.transpose(np.asarray(tp["conv2.weight"]), (2, 3, 1, 0)).reshape(TAP, 64)
    b2 = np.asarray(tp["conv2.bias"])[None, :]                      # (1, 64)

    wf1 = np.asarray(tp["fc1.weight"]).T                            # (64, 512)
    wf2 = np.asarray(tp["fc2.weight"]).T                            # (512, 256)
    wf3 = np.asarray(tp["fc3.weight"]).T                            # (256, 62)
    wf3p = np.zeros((wf3.shape[0], OUT_PAD), np.float32)
    wf3p[:, :NUM_LABELS] = wf3
    bf3p = np.zeros((1, OUT_PAD), np.float32)
    bf3p[0, :NUM_LABELS] = np.asarray(tp["fc3.bias"])

    cd = COMPUTE_DTYPE
    return {
        "d1": jnp.asarray(d1, cd),
        "b1": jnp.asarray(b1, jnp.float32),
        "w2": jnp.asarray(w2, cd),
        "b2": jnp.asarray(b2, jnp.float32),
        "w_fc1": jnp.asarray(wf1, cd),
        "b_fc1": jnp.asarray(np.asarray(tp["fc1.bias"])[None, :], jnp.float32),
        "w_fc2": jnp.asarray(wf2, cd),
        "b_fc2": jnp.asarray(np.asarray(tp["fc2.bias"])[None, :], jnp.float32),
        "w_fc3": jnp.asarray(wf3p, cd),
        "b_fc3": jnp.asarray(bf3p, jnp.float32),
    }


# --------------------------------------------------------------------------- #
# Pure-JAX reference (f32) for correctness check
# --------------------------------------------------------------------------- #
def reference_forward(x_nchw, tp):
    x = x_nchw.astype(jnp.float32)                                  # (B, 1, 8, 8)
    w1, b1 = tp["conv1.weight"], tp["conv1.bias"]
    y = jnp.zeros((x.shape[0], 32, 6, 6), jnp.float32)
    for kh in range(3):
        for kw in range(3):
            y = y + x[:, :, kh:kh + 6, kw:kw + 6] * w1[None, :, 0, kh, kw, None, None]
    y = jax.nn.relu(y + b1[None, :, None, None])
    p = jnp.max(y.reshape(x.shape[0], 32, 3, 2, 3, 2), axis=(3, 5))  # maxpool2d(2)
    z = jax.nn.relu(jnp.einsum("bchw,ochw->bo", p, tp["conv2.weight"]) + tp["conv2.bias"])
    h = jax.nn.relu(z @ tp["fc1.weight"].T + tp["fc1.bias"])
    h = jax.nn.relu(h @ tp["fc2.weight"].T + tp["fc2.bias"])
    return h @ tp["fc3.weight"].T + tp["fc3.bias"]


# --------------------------------------------------------------------------- #
if __name__ == "__main__":
    key = jax.random.PRNGKey(0)
    k_x, k_p = jax.random.split(key)
    # batch=2, channels=1, spatial=8x8 (spatial size implied by fc1 = Linear(64, 512))
    x = jax.random.normal(k_x, (2, 1, IMG, IMG), dtype=jnp.float32)

    torch_params = init_torch_params(k_p)
    kparams = prepare_kernel_params(torch_params)

    fwd = jax.jit(lambda xi: forward(xi, kparams))
    logits = jax.block_until_ready(fwd(x))

    assert logits.shape == (2, NUM_LABELS), logits.shape
    assert bool(jnp.all(jnp.isfinite(logits)))

    ref = reference_forward(x, torch_params)
    max_err = float(jnp.max(jnp.abs(logits - ref)))
    assert jnp.allclose(logits, ref, atol=7.5e-2, rtol=7.5e-2), f"max_err={max_err}"

    print("KERNEL_OK")
</pallas_src>

<mosaic_0001>
module attributes {stable_mosaic.version = 11 : i64} {
  func.func @fused_forward_kernel(%arg0: i32, %arg1: memref<2x64xbf16, #tpu.memory_space<vmem>>, %arg2: memref<64x1536xbf16, #tpu.memory_space<vmem>>, %arg3: memref<1x384xf32, #tpu.memory_space<vmem>>, %arg4: memref<384x64xbf16, #tpu.memory_space<vmem>>, %arg5: memref<1x64xf32, #tpu.memory_space<vmem>>, %arg6: memref<64x512xbf16, #tpu.memory_space<vmem>>, %arg7: memref<1x512xf32, #tpu.memory_space<vmem>>, %arg8: memref<512x256xbf16, #tpu.memory_space<vmem>>, %arg9: memref<1x256xf32, #tpu.memory_space<vmem>>, %arg10: memref<256x128xbf16, #tpu.memory_space<vmem>>, %arg11: memref<1x128xf32, #tpu.memory_space<vmem>>, %arg12: memref<2x128xf32, #tpu.memory_space<vmem>>) attributes {dimension_semantics = [#tpu.dimension_semantics<parallel>], iteration_bounds = array<i64: 1>, scalar_prefetch = 0 : i64, scratch_operands = 0 : i64, tpu.core_type = #tpu.core_type<tc>, window_params = [{transform_indices = @transform_0, window_bounds = array<i64: 2, 64>}, {pipeline_mode = #tpu.pipeline_mode<synchronous>, transform_indices = @transform_1, window_bounds = array<i64: 64, 1536>}, {pipeline_mode = #tpu.pipeline_mode<synchronous>, transform_indices = @transform_2, window_bounds = array<i64: 1, 384>}, {pipeline_mode = #tpu.pipeline_mode<synchronous>, transform_indices = @transform_3, window_bounds = array<i64: 384, 64>}, {pipeline_mode = #tpu.pipeline_mode<synchronous>, transform_indices = @transform_4, window_bounds = array<i64: 1, 64>}, {pipeline_mode = #tpu.pipeline_mode<synchronous>, transform_indices = @transform_5, window_bounds = array<i64: 64, 512>}, {pipeline_mode = #tpu.pipeline_mode<synchronous>, transform_indices = @transform_6, window_bounds = array<i64: 1, 512>}, {pipeline_mode = #tpu.pipeline_mode<synchronous>, transform_indices = @transform_7, window_bounds = array<i64: 512, 256>}, {pipeline_mode = #tpu.pipeline_mode<synchronous>, transform_indices = @transform_8, window_bounds = array<i64: 1, 256>}, {pipeline_mode = #tpu.pipeline_mode<synchronous>, transform_indices = @transform_9, window_bounds = array<i64: 256, 128>}, {pipeline_mode = #tpu.pipeline_mode<synchronous>, transform_indices = @transform_10, window_bounds = array<i64: 1, 128>}, {transform_indices = @transform_11, window_bounds = array<i64: 2, 128>}]} {
    %c0 = arith.constant 0 : index
    %c0_0 = arith.constant 0 : index
    %0 = vector.load %arg1[%c0, %c0_0] : memref<2x64xbf16, #tpu.memory_space<vmem>>, vector<2x64xbf16>
    %c0_1 = arith.constant 0 : index
    %c0_2 = arith.constant 0 : index
    %1 = vector.load %arg2[%c0_1, %c0_2] : memref<64x1536xbf16, #tpu.memory_space<vmem>>, vector<64x1536xbf16>
    %cst = arith.constant dense<0.000000e+00> : vector<2x1536xf32>
    %2 = tpu.matmul %0, %1, %cst {dimension_numbers = #tpu.dot_dimension_numbers<[1], [0], [0], [1], [0, 0, 1, 1], [], []>} : vector<2x64xbf16>, vector<64x1536xbf16>, vector<2x1536xf32> -> vector<2x1536xf32>
    %3 = vector.extract_strided_slice %2 {offsets = [0, 0], sizes = [2, 384], strides = [1, 1]} : vector<2x1536xf32> to vector<2x384xf32>
    %4 = vector.extract_strided_slice %2 {offsets = [0, 384], sizes = [2, 384], strides = [1, 1]} : vector<2x1536xf32> to vector<2x384xf32>
    %5 = arith.maximumf %3, %4 : vector<2x384xf32>
    %6 = vector.extract_strided_slice %2 {offsets = [0, 768], sizes = [2, 384], strides = [1, 1]} : vector<2x1536xf32> to vector<2x384xf32>
    %7 = arith.maximumf %5, %6 : vector<2x384xf32>
    %8 = vector.extract_strided_slice %2 {offsets = [0, 1152], sizes = [2, 384], strides = [1, 1]} : vector<2x1536xf32> to vector<2x384xf32>
    %9 = arith.maximumf %7, %8 : vector<2x384xf32>
    %c0_3 = arith.constant 0 : index
    %c0_4 = arith.constant 0 : index
    %10 = vector.load %arg3[%c0_3, %c0_4] : memref<1x384xf32, #tpu.memory_space<vmem>>, vector<1x384xf32>
    %11 = vector.broadcast %10 : vector<1x384xf32> to vector<2x384xf32>
    %12 = arith.addf %9, %11 : vector<2x384xf32>
    %cst_5 = arith.constant 0.000000e+00 : f32
    %13 = vector.broadcast %cst_5 : f32 to vector<2x384xf32>
    %14 = arith.maximumf %12, %13 : vector<2x384xf32>
    %15 = arith.truncf %14 : vector<2x384xf32> to vector<2x384xbf16>
    %c0_6 = arith.constant 0 : index
    %c0_7 = arith.constant 0 : index
    %16 = vector.load %arg4[%c0_6, %c0_7] : memref<384x64xbf16, #tpu.memory_space<vmem>>, vector<384x64xbf16>
    %cst_8 = arith.constant dense<0.000000e+00> : vector<2x64xf32>
    %17 = tpu.matmul %15, %16, %cst_8 {dimension_numbers = #tpu.dot_dimension_numbers<[1], [0], [0], [1], [0, 0, 1, 1], [], []>} : vector<2x384xbf16>, vector<384x64xbf16>, vector<2x64xf32> -> vector<2x64xf32>
    %c0_9 = arith.constant 0 : index
    %c0_10 = arith.constant 0 : index
    %18 = vector.load %arg5[%c0_9, %c0_10] : memref<1x64xf32, #tpu.memory_space<vmem>>, vector<1x64xf32>
    %19 = vector.broadcast %18 : vector<1x64xf32> to vector<2x64xf32>
    %20 = arith.addf %17, %19 : vector<2x64xf32>
    %cst_11 = arith.constant 0.000000e+00 : f32
    %21 = vector.broadcast %cst_11 : f32 to vector<2x64xf32>
    %22 = arith.maximumf %20, %21 : vector<2x64xf32>
    %23 = arith.truncf %22 : vector<2x64xf32> to vector<2x64xbf16>
    %c0_12 = arith.constant 0 : index
    %c0_13 = arith.constant 0 : index
    %24 = vector.load %arg6[%c0_12, %c0_13] : memref<64x512xbf16, #tpu.memory_space<vmem>>, vector<64x512xbf16>
    %cst_14 = arith.constant dense<0.000000e+00> : vector<2x512xf32>
    %25 = tpu.matmul %23, %24, %cst_14 {dimension_numbers = #tpu.dot_dimension_numbers<[1], [0], [0], [1], [0, 0, 1, 1], [], []>} : vector<2x64xbf16>, vector<64x512xbf16>, vector<2x512xf32> -> vector<2x512xf32>
    %c0_15 = arith.constant 0 : index
    %c0_16 = arith.constant 0 : index
    %26 = vector.load %arg7[%c0_15, %c0_16] : memref<1x512xf32, #tpu.memory_space<vmem>>, vector<1x512xf32>
    %27 = vector.broadcast %26 : vector<1x512xf32> to vector<2x512xf32>
    %28 = arith.addf %25, %27 : vector<2x512xf32>
    %cst_17 = arith.constant 0.000000e+00 : f32
    %29 = vector.broadcast %cst_17 : f32 to vector<2x512xf32>
    %30 = arith.maximumf %28, %29 : vector<2x512xf32>
    %31 = arith.truncf %30 : vector<2x512xf32> to vector<2x512xbf16>
    %c0_18 = arith.constant 0 : index
    %c0_19 = arith.constant 0 : index
    %32 = vector.load %arg8[%c0_18, %c0_19] : memref<512x256xbf16, #tpu.memory_space<vmem>>, vector<512x256xbf16>
    %cst_20 = arith.constant dense<0.000000e+00> : vector<2x256xf32>
    %33 = tpu.matmul %31, %32, %cst_20 {dimension_numbers = #tpu.dot_dimension_numbers<[1], [0], [0], [1], [0, 0, 1, 1], [], []>} : vector<2x512xbf16>, vector<512x256xbf16>, vector<2x256xf32> -> vector<2x256xf32>
    %c0_21 = arith.constant 0 : index
    %c0_22 = arith.constant 0 : index
    %34 = vector.load %arg9[%c0_21, %c0_22] : memref<1x256xf32, #tpu.memory_space<vmem>>, vector<1x256xf32>
    %35 = vector.broadcast %34 : vector<1x256xf32> to vector<2x256xf32>
    %36 = arith.addf %33, %35 : vector<2x256xf32>
    %cst_23 = arith.constant 0.000000e+00 : f32
    %37 = vector.broadcast %cst_23 : f32 to vector<2x256xf32>
    %38 = arith.maximumf %36, %37 : vector<2x256xf32>
    %39 = arith.truncf %38 : vector<2x256xf32> to vector<2x256xbf16>
    %c0_24 = arith.constant 0 : index
    %c0_25 = arith.constant 0 : index
    %40 = vector.load %arg10[%c0_24, %c0_25] : memref<256x128xbf16, #tpu.memory_space<vmem>>, vector<256x128xbf16>
    %cst_26 = arith.constant dense<0.000000e+00> : vector<2x128xf32>
    %41 = tpu.matmul %39, %40, %cst_26 {dimension_numbers = #tpu.dot_dimension_numbers<[1], [0], [0], [1], [0, 0, 1, 1], [], []>} : vector<2x256xbf16>, vector<256x128xbf16>, vector<2x128xf32> -> vector<2x128xf32>
    %c0_27 = arith.constant 0 : index
    %c0_28 = arith.constant 0 : index
    %42 = vector.load %arg11[%c0_27, %c0_28] : memref<1x128xf32, #tpu.memory_space<vmem>>, vector<1x128xf32>
    %43 = vector.broadcast %42 : vector<1x128xf32> to vector<2x128xf32>
    %44 = arith.addf %41, %43 : vector<2x128xf32>
    %c0_29 = arith.constant 0 : index
    %c0_30 = arith.constant 0 : index
    %45 = vector.load %arg12[%c0_29, %c0_30] : memref<2x128xf32, #tpu.memory_space<vmem>>, vector<2x128xf32>
    tpu.vector_store %arg12[%c0_29, %c0_30], %44 {strides = array<i32>} : memref<2x128xf32, #tpu.memory_space<vmem>>, vector<2x128xf32>,
    return
  }
  func.func @transform_0(%arg0: i32) -> (i32, i32) {
    %c0_i32 = arith.constant 0 : i32
    %c0_i32_0 = arith.constant 0 : i32
    return %arg0, %c0_i32 : i32, i32
  }
  func.func @transform_1(%arg0: i32) -> (i32, i32) {
    %c0_i32 = arith.constant 0 : i32
    %c0_i32_0 = arith.constant 0 : i32
    %c0_i32_1 = arith.constant 0 : i32
    return %c0_i32, %c0_i32_0 : i32, i32
  }
  func.func @transform_2(%arg0: i32) -> (i32, i32) {
    %c0_i32 = arith.constant 0 : i32
    %c0_i32_0 = arith.constant 0 : i32
    %c0_i32_1 = arith.constant 0 : i32
    return %c0_i32, %c0_i32_0 : i32, i32
  }
  func.func @transform_3(%arg0: i32) -> (i32, i32) {
    %c0_i32 = arith.constant 0 : i32
    %c0_i32_0 = arith.constant 0 : i32
    %c0_i32_1 = arith.constant 0 : i32
    return %c0_i32, %c0_i32_0 : i32, i32
  }
  func.func @transform_4(%arg0: i32) -> (i32, i32) {
    %c0_i32 = arith.constant 0 : i32
    %c0_i32_0 = arith.constant 0 : i32
    %c0_i32_1 = arith.constant 0 : i32
    return %c0_i32, %c0_i32_0 : i32, i32
  }
  func.func @transform_5(%arg0: i32) -> (i32, i32) {
    %c0_i32 = arith.constant 0 : i32
    %c0_i32_0 = arith.constant 0 : i32
    %c0_i32_1 = arith.constant 0 : i32
    return %c0_i32, %c0_i32_0 : i32, i32
  }
  func.func @transform_6(%arg0: i32) -> (i32, i32) {
    %c0_i32 = arith.constant 0 : i32
    %c0_i32_0 = arith.constant 0 : i32
    %c0_i32_1 = arith.constant 0 : i32
    return %c0_i32, %c0_i32_0 : i32, i32
  }
  func.func @transform_7(%arg0: i32) -> (i32, i32) {
    %c0_i32 = arith.constant 0 : i32
    %c0_i32_0 = arith.constant 0 : i32
    %c0_i32_1 = arith.constant 0 : i32
    return %c0_i32, %c0_i32_0 : i32, i32
  }
  func.func @transform_8(%arg0: i32) -> (i32, i32) {
    %c0_i32 = arith.constant 0 : i32
    %c0_i32_0 = arith.constant 0 : i32
    %c0_i32_1 = arith.constant 0 : i32
    return %c0_i32, %c0_i32_0 : i32, i32
  }
  func.func @transform_9(%arg0: i32) -> (i32, i32) {
    %c0_i32 = arith.constant 0 : i32
    %c0_i32_0 = arith.constant 0 : i32
    %c0_i32_1 = arith.constant 0 : i32
    return %c0_i32, %c0_i32_0 : i32, i32
  }
  func.func @transform_10(%arg0: i32) -> (i32, i32) {
    %c0_i32 = arith.constant 0 : i32
    %c0_i32_0 = arith.constant 0 : i32
    %c0_i32_1 = arith.constant 0 : i32
    return %c0_i32, %c0_i32_0 : i32, i32
  }
  func.func @transform_11(%arg0: i32) -> (i32, i32) {
    %c0_i32 = arith.constant 0 : i32
    %c0_i32_0 = arith.constant 0 : i32
    return %arg0, %c0_i32 : i32, i32
  }
}

</mosaic_0001>

<llo_original>
// kernel: _lambda_.1
$region0: #{_lambda_.1}
  #allocation0 [shape = 'u32[]', space=smem, size = 0x4, offset = 0x4, fixed_abs, tag = 'smem constant byte address 0x4 - core index']
  #allocation1 [shape = 'u32[144,128]{1,0:T(1,128)}', space=vmem, size = 0x12000, scoped, tag = 'internal scratch']
  %s0 = inlined_call_operand.vmem [shape: bf16[2,64], index: 0, kind: input, shape index: {}]
  %s1 = inlined_call_operand.hbm [shape: bf16[64,1536], index: 1, kind: input, shape index: {}]
  %s2 = inlined_call_operand.vmem [shape: f32[1,384], index: 2, kind: input, shape index: {}]
  %s3 = inlined_call_operand.hbm [shape: bf16[384,64], index: 3, kind: input, shape index: {}]
  %s4 = inlined_call_operand.vmem [shape: f32[1,64], index: 4, kind: input, shape index: {}]
  %s5 = inlined_call_operand.hbm [shape: bf16[64,512], index: 5, kind: input, shape index: {}]
  %s6 = inlined_call_operand.vmem [shape: f32[1,512], index: 6, kind: input, shape index: {}]
  %s7 = inlined_call_operand.hbm [shape: bf16[512,256], index: 7, kind: input, shape index: {}]
  %s8 = inlined_call_operand.vmem [shape: f32[1,256], index: 8, kind: input, shape index: {}]
  %s9 = inlined_call_operand.hbm [shape: bf16[256,128], index: 9, kind: input, shape index: {}]
  %s10 = inlined_call_operand.vmem [shape: f32[1,128], index: 10, kind: input, shape index: {}]
  %s11 = inlined_call_operand.hbm [shape: f32[2,128], index: 11, kind: output, shape index: {}]
  %s12 = sld [smem:[#allocation0]]
  $region74: #{_lambda_.1} parent=0
    _
  %s14 = ssub.s32 1, %s12
  %s15 = scalar_select 0, %s14, %s12
  $region1: #{_lambda_.1} parent=0
    #allocation2 [shape = 'u8[196608]{0}', space=vmem, size = 0x30000, scoped, tag = 'input window, operand 1, single buffered']
    #allocation3 [shape = 's32[1]{0}', space=sflag, size = 0x4, scoped, tag = 'scoped memory for _lambda_.1']
    #allocation4 [shape = 's32[1]{0}', space=sflag, size = 0x4, scoped, tag = 'scoped memory for _lambda_.1']
    #allocation5 [shape = 'u8[98304]{0}', space=vmem, size = 0x18000, scoped, tag = 'input window, operand 3, single buffered']
    #allocation6 [shape = 's32[1]{0}', space=sflag, size = 0x4, scoped, tag = 'scoped memory for _lambda_.1']
    #allocation7 [shape = 'u8[65536]{0}', space=vmem, size = 0x10000, scoped, tag = 'input window, operand 5, single buffered']
    #allocation8 [shape = 'u8[262144]{0}', space=vmem, size = 0x40000, scoped, tag = 'input window, operand 7, single buffered']
    #allocation9 [shape = 's32[1]{0}', space=sflag, size = 0x4, scoped, tag = 'scoped memory for _lambda_.1']
    #allocation10 [shape = 'u8[65536]{0}', space=vmem, size = 0x10000, scoped, tag = 'input window, operand 9, single buffered']
    #allocation11 [shape = 'u8[1024]{0}', space=vmem, size = 0x400, scoped, tag = 'output window, operand 0, single buffered']
    %16 = vsyncpa [#allocation3], 0
    %17 = vsyncpa [#allocation6], 0
    %18 = vsyncpa [#allocation9], 0
    %19 = vsyncpa [#allocation4], 0
    // Predicated region
    $region2: #{_lambda_.1} parent=1 // pred_check
      _
    $region3: #{_lambda_.1} parent=1 // pred_check_branch
      %21 = sbr.rel (0) target = $region5
    $region4: #{_lambda_.1} parent=1 // pred_region
      _
    $region5: #{_lambda_.1} parent=1 // pred_fallthru
      _
    // Predicated region
    $region6: #{_lambda_.1} parent=1 // pred_check
      _
    $region7: #{_lambda_.1} parent=1 // pred_check_branch
      %23 = sbr.rel (0) target = $region9
    $region8: #{_lambda_.1} parent=1 // pred_region
      %s25 = ssub.s32 6144, 6144
      %26 = vsyncadd [#allocation3], %s25
      %s27 = sshll.u32 [#allocation2], 4
      %s28 = int_to_ptr.vmem [resolvable:$true] %s27
      %33 = dma.hbm_to_vmem [thread:$0]  %s1, 6144, %s28, [#allocation3], 768, 768, 48
    $region9: #{_lambda_.1} parent=1 // pred_fallthru
      _
    // Predicated region
    $region10: #{_lambda_.1} parent=1 // pred_check
      _
    $region11: #{_lambda_.1} parent=1 // pred_check_branch
      %35 = sbr.rel (0) target = $region13
    $region12: #{_lambda_.1} parent=1 // pred_region
      _
    $region13: #{_lambda_.1} parent=1 // pred_fallthru
      _
    // Predicated region
    $region14: #{_lambda_.1} parent=1 // pred_check
      _
    $region15: #{_lambda_.1} parent=1 // pred_check_branch
      %37 = sbr.rel (0) target = $region17
    $region16: #{_lambda_.1} parent=1 // pred_region
      %s39 = ssub.s32 3072, 3072
      %40 = vsyncadd [#allocation6], %s39
      %s41 = sshll.u32 [#allocation5], 4
      %s42 = int_to_ptr.vmem [resolvable:$true] %s41
      %47 = dma.hbm_to_vmem [thread:$0]  %s3, 3072, %s42, [#allocation6], 64, 64, 4
    $region17: #{_lambda_.1} parent=1 // pred_fallthru
      _
    // Predicated region
    $region18: #{_lambda_.1} parent=1 // pred_check
      _
    $region19: #{_lambda_.1} parent=1 // pred_check_branch
      %49 = sbr.rel (0) target = $region21
    $region20: #{_lambda_.1} parent=1 // pred_region
      _
    $region21: #{_lambda_.1} parent=1 // pred_fallthru
      _
    // Predicated region
    $region22: #{_lambda_.1} parent=1 // pred_check
      _
    $region23: #{_lambda_.1} parent=1 // pred_check_branch
      %51 = sbr.rel (0) target = $region25
    $region24: #{_lambda_.1} parent=1 // pred_region
      %s53 = ssub.s32 2048, 2048
      %54 = vsyncadd [#allocation6], %s53
      %s55 = sshll.u32 [#allocation7], 4
      %s56 = int_to_ptr.vmem [resolvable:$true] %s55
      %61 = dma.hbm_to_vmem [thread:$0]  %s5, 2048, %s56, [#allocation6], 256, 256, 16
    $region25: #{_lambda_.1} parent=1 // pred_fallthru
      _
    // Predicated region
    $region26: #{_lambda_.1} parent=1 // pred_check
      _
    $region27: #{_lambda_.1} parent=1 // pred_check_branch
      %63 = sbr.rel (0) target = $region29
    $region28: #{_lambda_.1} parent=1 // pred_region
      _
    $region29: #{_lambda_.1} parent=1 // pred_fallthru
      _
    // Predicated region
    $region30: #{_lambda_.1} parent=1 // pred_check
      _
    $region31: #{_lambda_.1} parent=1 // pred_check_branch
      %65 = sbr.rel (0) target = $region33
    $region32: #{_lambda_.1} parent=1 // pred_region
      %s67 = ssub.s32 8192, 8192
      %68 = vsyncadd [#allocation9], %s67
      %s69 = sshll.u32 [#allocation8], 4
      %s70 = int_to_ptr.vmem [resolvable:$true] %s69
      %75 = dma.hbm_to_vmem [thread:$0]  %s7, 8192, %s70, [#allocation9], 128, 128, 8
    $region33: #{_lambda_.1} parent=1 // pred_fallthru
      _
    // Predicated region
    $region34: #{_lambda_.1} parent=1 // pred_check
      _
    $region35: #{_lambda_.1} parent=1 // pred_check_branch
      %77 = sbr.rel (0) target = $region37
    $region36: #{_lambda_.1} parent=1 // pred_region
      _
    $region37: #{_lambda_.1} parent=1 // pred_fallthru
      _
    // Predicated region
    $region38: #{_lambda_.1} parent=1 // pred_check
      _
    $region39: #{_lambda_.1} parent=1 // pred_check_branch
      %79 = sbr.rel (0) target = $region41
    $region40: #{_lambda_.1} parent=1 // pred_region
      %s81 = ssub.s32 2048, 2048
      %82 = vsyncadd [#allocation9], %s81
      %s83 = sshll.u32 [#allocation10], 4
      %s84 = int_to_ptr.vmem [resolvable:$true] %s83
      %89 = dma.hbm_to_vmem [thread:$0]  %s9, 2048, %s84, [#allocation9], 64, 64, 4
    $region41: #{_lambda_.1} parent=1 // pred_fallthru
      _
    // Predicated region
    $region42: #{_lambda_.1} parent=1 // pred_check
      _
    $region43: #{_lambda_.1} parent=1 // pred_check_branch
      %91 = sbr.rel (0) target = $region45
    $region44: #{_lambda_.1} parent=1 // pred_region
      _
    $region45: #{_lambda_.1} parent=1 // pred_fallthru
      _
    // Predicated region
    $region46: #{_lambda_.1} parent=1 // pred_check
      _
    $region47: #{_lambda_.1} parent=1 // pred_check_branch
      %93 = sbr.rel (0) target = $region49
    $region48: #{_lambda_.1} parent=1 // pred_region
      %94 = dma.done [#allocation3], 6144
    $region49: #{_lambda_.1} parent=1 // pred_fallthru
      _
    // Predicated region
    $region50: #{_lambda_.1} parent=1 // pred_check
      _
    $region51: #{_lambda_.1} parent=1 // pred_check_branch
      %96 = sbr.rel (0) target = $region53
    $region52: #{_lambda_.1} parent=1 // pred_region
      %97 = dma.done [#allocation6], 3072
    $region53: #{_lambda_.1} parent=1 // pred_fallthru
      _
    // Predicated region
    $region54: #{_lambda_.1} parent=1 // pred_check
      _
    $region55: #{_lambda_.1} parent=1 // pred_check_branch
      %99 = sbr.rel (0) target = $region57
    $region56: #{_lambda_.1} parent=1 // pred_region
      %100 = dma.done [#allocation6], 2048
    $region57: #{_lambda_.1} parent=1 // pred_fallthru
      _
    // Predicated region
    $region58: #{_lambda_.1} parent=1 // pred_check
      _
    $region59: #{_lambda_.1} parent=1 // pred_check_branch
      %102 = sbr.rel (0) target = $region61
    $region60: #{_lambda_.1} parent=1 // pred_region
      %103 = dma.done [#allocation9], 8192
    $region61: #{_lambda_.1} parent=1 // pred_fallthru
      _
    // Predicated region
    $region62: #{_lambda_.1} parent=1 // pred_check
      _
    $region63: #{_lambda_.1} parent=1 // pred_check_branch
      %105 = sbr.rel (0) target = $region65
    $region64: #{_lambda_.1} parent=1 // pred_region
      %106 = dma.done [#allocation9], 2048
    $region65: #{_lambda_.1} parent=1 // pred_fallthru
      _
    %v108 = vld [vmem:[%s0] sm:$0x1]
    %v109 = vld [vmem:[#allocation2] sm:$0xff]
    %v110 = vld [vmem:[#allocation2 + $0x8] sm:$0xff]
    %v111 = vld [vmem:[#allocation2 + $0x10] sm:$0xff]
    %v112 = vld [vmem:[#allocation2 + $0x18] sm:$0xff]
    %v113 = vld [vmem:[#allocation2 + $0x20] sm:$0xff]
    %v114 = vld [vmem:[#allocation2 + $0x28] sm:$0xff]
    %v115 = vld [vmem:[#allocation2 + $0x30] sm:$0xff]
    %v116 = vld [vmem:[#allocation2 + $0x38] sm:$0xff]
    %v117 = vld [vmem:[#allocation2 + $0x40] sm:$0xff]
    %v118 = vld [vmem:[#allocation2 + $0x48] sm:$0xff]
    %v119 = vld [vmem:[#allocation2 + $0x50] sm:$0xff]
    %v120 = vld [vmem:[#allocation2 + $0x58] sm:$0xff]
    %v121 = vld [vmem:[#allocation2 + $0x60] sm:$0xff]
    %v122 = vld [vmem:[#allocation2 + $0x68] sm:$0xff]
    %v123 = vld [vmem:[#allocation2 + $0x70] sm:$0xff]
    %v124 = vld [vmem:[#allocation2 + $0x78] sm:$0xff]
    %v125 = vld [vmem:[#allocation2 + $0x80] sm:$0xff]
    %v126 = vld [vmem:[#allocation2 + $0x88] sm:$0xff]
    %v127 = vld [vmem:[#allocation2 + $0x90] sm:$0xff]
    %v128 = vld [vmem:[#allocation2 + $0x98] sm:$0xff]
    %v129 = vld [vmem:[#allocation2 + $0xa0] sm:$0xff]
    %v130 = vld [vmem:[#allocation2 + $0xa8] sm:$0xff]
    %v131 = vld [vmem:[#allocation2 + $0xb0] sm:$0xff]
    %v132 = vld [vmem:[#allocation2 + $0xb8] sm:$0xff]
    %v133 = vld [vmem:[#allocation2 + $0xc0] sm:$0xff]
    %v134 = vld [vmem:[#allocation2 + $0xc8] sm:$0xff]
    %v135 = vld [vmem:[#allocation2 + $0xd0] sm:$0xff]
    %v136 = vld [vmem:[#allocation2 + $0xd8] sm:$0xff]
    %v137 = vld [vmem:[#allocation2 + $0xe0] sm:$0xff]
    %v138 = vld [vmem:[#allocation2 + $0xe8] sm:$0xff]
    %v139 = vld [vmem:[#allocation2 + $0xf0] sm:$0xff]
    %v140 = vld [vmem:[#allocation2 + $0xf8] sm:$0xff]
    %v141 = vld [vmem:[#allocation2 + $0x100] sm:$0xff]
    %v142 = vld [vmem:[#allocation2 + $0x108] sm:$0xff]
    %v143 = vld [vmem:[#allocation2 + $0x110] sm:$0xff]
    %v144 = vld [vmem:[#allocation2 + $0x118] sm:$0xff]
    %v145 = vld [vmem:[#allocation2 + $0x120] sm:$0xff]
    %v146 = vld [vmem:[#allocation2 + $0x128] sm:$0xff]
    %v147 = vld [vmem:[#allocation2 + $0x130] sm:$0xff]
    %v148 = vld [vmem:[#allocation2 + $0x138] sm:$0xff]
    %v149 = vld [vmem:[#allocation2 + $0x140] sm:$0xff]
    %v150 = vld [vmem:[#allocation2 + $0x148] sm:$0xff]
    %v151 = vld [vmem:[#allocation2 + $0x150] sm:$0xff]
    %v152 = vld [vmem:[#allocation2 + $0x158] sm:$0xff]
    %v153 = vld [vmem:[#allocation2 + $0x160] sm:$0xff]
    %v154 = vld [vmem:[#allocation2 + $0x168] sm:$0xff]
    %v155 = vld [vmem:[#allocation2 + $0x170] sm:$0xff]
    %v156 = vld [vmem:[#allocation2 + $0x178] sm:$0xff]
    %v205 = vunpack.c.l.b16 %v109
    %v206 = vunpack.c.h.b16 %v109
    %v207 = vunpack.c.l.b16 %v110
    %v208 = vunpack.c.h.b16 %v110
    %v209 = vunpack.c.l.b16 %v111
    %v210 = vunpack.c.h.b16 %v111
    %v211 = vunpack.c.l.b16 %v112
    %v212 = vunpack.c.h.b16 %v112
    %v213 = vunpack.c.l.b16 %v113
    %v214 = vunpack.c.h.b16 %v113
    %v215 = vunpack.c.l.b16 %v114
    %v216 = vunpack.c.h.b16 %v114
    %v217 = vunpack.c.l.b16 %v115
    %v218 = vunpack.c.h.b16 %v115
    %v219 = vunpack.c.l.b16 %v116
    %v220 = vunpack.c.h.b16 %v116
    %v221 = vunpack.c.l.b16 %v117
    %v222 = vunpack.c.h.b16 %v117
    %v223 = vunpack.c.l.b16 %v118
    %v224 = vunpack.c.h.b16 %v118
    %v225 = vunpack.c.l.b16 %v119
    %v226 = vunpack.c.h.b16 %v119
    %v227 = vunpack.c.l.b16 %v120
    %v228 = vunpack.c.h.b16 %v120
    %v229 = vunpack.c.l.b16 %v121
    %v230 = vunpack.c.h.b16 %v121
    %v231 = vunpack.c.l.b16 %v122
    %v232 = vunpack.c.h.b16 %v122
    %v233 = vunpack.c.l.b16 %v123
    %v234 = vunpack.c.h.b16 %v123
    %v235 = vunpack.c.l.b16 %v124
    %v236 = vunpack.c.h.b16 %v124
    %v237 = vunpack.c.l.b16 %v125
    %v238 = vunpack.c.h.b16 %v125
    %v239 = vunpack.c.l.b16 %v126
    %v240 = vunpack.c.h.b16 %v126
    %v241 = vunpack.c.l.b16 %v127
    %v242 = vunpack.c.h.b16 %v127
    %v243 = vunpack.c.l.b16 %v128
    %v244 = vunpack.c.h.b16 %v128
    %v245 = vunpack.c.l.b16 %v129
    %v246 = vunpack.c.h.b16 %v129
    %v247 = vunpack.c.l.b16 %v130
    %v248 = vunpack.c.h.b16 %v130
    %v249 = vunpack.c.l.b16 %v131
    %v250 = vunpack.c.h.b16 %v131
    %v251 = vunpack.c.l.b16 %v132
    %v252 = vunpack.c.h.b16 %v132
    %v253 = vunpack.c.l.b16 %v133
    %v254 = vunpack.c.h.b16 %v133
    %v255 = vunpack.c.l.b16 %v134
    %v256 = vunpack.c.h.b16 %v134
    %v257 = vunpack.c.l.b16 %v135
    %v258 = vunpack.c.h.b16 %v135
    %v259 = vunpack.c.l.b16 %v136
    %v260 = vunpack.c.h.b16 %v136
    %v261 = vunpack.c.l.b16 %v137
    %v262 = vunpack.c.h.b16 %v137
    %v263 = vunpack.c.l.b16 %v138
    %v264 = vunpack.c.h.b16 %v138
    %v265 = vunpack.c.l.b16 %v139
    %v266 = vunpack.c.h.b16 %v139
    %v267 = vunpack.c.l.b16 %v140
    %v268 = vunpack.c.h.b16 %v140
    %v269 = vunpack.c.l.b16 %v141
    %v270 = vunpack.c.h.b16 %v141
    %v271 = vunpack.c.l.b16 %v142
    %v272 = vunpack.c.h.b16 %v142
    %v273 = vunpack.c.l.b16 %v143
    %v274 = vunpack.c.h.b16 %v143
    %v275 = vunpack.c.l.b16 %v144
    %v276 = vunpack.c.h.b16 %v144
    %v277 = vunpack.c.l.b16 %v145
    %v278 = vunpack.c.h.b16 %v145
    %v279 = vunpack.c.l.b16 %v146
    %v280 = vunpack.c.h.b16 %v146
    %v281 = vunpack.c.l.b16 %v147
    %v282 = vunpack.c.h.b16 %v147
    %v283 = vunpack.c.l.b16 %v148
    %v284 = vunpack.c.h.b16 %v148
    %v285 = vunpack.c.l.b16 %v149
    %v286 = vunpack.c.h.b16 %v149
    %v287 = vunpack.c.l.b16 %v150
    %v288 = vunpack.c.h.b16 %v150
    %v289 = vunpack.c.l.b16 %v151
    %v290 = vunpack.c.h.b16 %v151
    %v291 = vunpack.c.l.b16 %v152
    %v292 = vunpack.c.h.b16 %v152
    %v293 = vunpack.c.l.b16 %v153
    %v294 = vunpack.c.h.b16 %v153
    %v295 = vunpack.c.l.b16 %v154
    %v296 = vunpack.c.h.b16 %v154
    %v297 = vunpack.c.l.b16 %v155
    %v298 = vunpack.c.h.b16 %v155
    %v299 = vunpack.c.l.b16 %v156
    %v300 = vunpack.c.h.b16 %v156
    %v301 = vpack.c.b16 %v217, %v205
    %v302 = vpack.c.b16 %v218, %v206
    %v303 = vpack.c.b16 %v219, %v207
    %v304 = vpack.c.b16 %v220, %v208
    %v305 = vpack.c.b16 %v221, %v209
    %v306 = vpack.c.b16 %v222, %v210
    %v307 = vpack.c.b16 %v223, %v211
    %v308 = vpack.c.b16 %v224, %v212
    %v309 = vpack.c.b16 %v225, %v213
    %v310 = vpack.c.b16 %v226, %v214
    %v311 = vpack.c.b16 %v227, %v215
    %v312 = vpack.c.b16 %v228, %v216
    %v313 = vpack.c.b16 %v241, %v229
    %v314 = vpack.c.b16 %v242, %v230
    %v315 = vpack.c.b16 %v243, %v231
    %v316 = vpack.c.b16 %v244, %v232
    %v317 = vpack.c.b16 %v245, %v233
    %v318 = vpack.c.b16 %v246, %v234
    %v319 = vpack.c.b16 %v247, %v235
    %v320 = vpack.c.b16 %v248, %v236
    %v321 = vpack.c.b16 %v249, %v237
    %v322 = vpack.c.b16 %v250, %v238
    %v323 = vpack.c.b16 %v251, %v239
    %v324 = vpack.c.b16 %v252, %v240
    %v325 = vpack.c.b16 %v265, %v253
    %v326 = vpack.c.b16 %v266, %v254
    %v327 = vpack.c.b16 %v267, %v255
    %v328 = vpack.c.b16 %v268, %v256
    %v329 = vpack.c.b16 %v269, %v257
    %v330 = vpack.c.b16 %v270, %v258
    %v331 = vpack.c.b16 %v271, %v259
    %v332 = vpack.c.b16 %v272, %v260
    %v333 = vpack.c.b16 %v273, %v261
    %v334 = vpack.c.b16 %v274, %v262
    %v335 = vpack.c.b16 %v275, %v263
    %v336 = vpack.c.b16 %v276, %v264
    %v337 = vpack.c.b16 %v289, %v277
    %v338 = vpack.c.b16 %v290, %v278
    %v339 = vpack.c.b16 %v291, %v279
    %v340 = vpack.c.b16 %v292, %v280
    %v341 = vpack.c.b16 %v293, %v281
    %v342 = vpack.c.b16 %v294, %v282
    %v343 = vpack.c.b16 %v295, %v283
    %v344 = vpack.c.b16 %v296, %v284
    %v345 = vpack.c.b16 %v297, %v285
    %v346 = vpack.c.b16 %v298, %v286
    %v347 = vpack.c.b16 %v299, %v287
    %v348 = vpack.c.b16 %v300, %v288
    %vm397 = vcmask 523264
    %v399 = vsel %vm397, %v108, 0
    %401 = vmatprep.subr.bf16.mxu0 0
    %402 = vmatpush1.bf16.msra.mxu0 0
    %403 = vmatprep.subr.bf16.mxu0 0
    %404 = vmatpush1.bf16.msra.mxu0 0
    %405 = vmatprep.subr.bf16.mxu0 0
    %406 = vmatpush1.bf16.msra.mxu0 0
    %407 = vmatprep.subr.bf16.mxu0 0
    %408 = vmatpush1.bf16.msra.mxu0 0
    %409 = vmatprep.subr.bf16.mxu0 %v338
    %410 = vmatpush1.bf16.msra.mxu0 %v337
    %411 = vmatprep.subr.bf16.mxu0 %v326
    %412 = vmatpush1.bf16.msra.mxu0 %v325
    %413 = vmatprep.subr.bf16.mxu0 %v314
    %414 = vmatpush1.bf16.msra.mxu0 %v313
    %415 = vmatprep.subr.bf16.mxu0 %v302
    %416 = vmatpush1.bf16.msra.mxu0 %v301
    %417 = vmatprep.subr.bf16.mxu0 0
    %418 = vmatpush2.bf16.msra.mxu0 0
    %419 = vmatprep.subr.bf16.mxu0 0
    %420 = vmatpush2.bf16.msra.mxu0 0
    %421 = vmatprep.subr.bf16.mxu0 0
    %422 = vmatpush2.bf16.msra.mxu0 0
    %423 = vmatprep.subr.bf16.mxu0 0
    %424 = vmatpush2.bf16.msra.mxu0 0
    %425 = vmatprep.subr.bf16.mxu0 0
    %426 = vmatpush2.bf16.msra.mxu0 0
    %427 = vmatprep.subr.bf16.mxu0 0
    %428 = vmatpush2.bf16.msra.mxu0 0
    %429 = vmatprep.subr.bf16.mxu0 0
    %430 = vmatpush2.bf16.msra.mxu0 0
    %431 = vmatprep.subr.bf16.mxu0 0
    %432 = vmatpush2.bf16.msra.mxu0 0
    %433 = vmatprep.mubr.bf16.mxu0 0
    %434 = vmatmul.mubr.bf16.gmra.mxu0 %v399
    %v435 = vpop.f32.mrf.mxu0
    %v436 = vadd.f32 0.0, %v435
    %v437 = vpop.f32.mrf.mxu0
    %v438 = vadd.f32 0.0, %v437
    %v439 = vpop.f32.mrf.mxu0
    %v440 = vpop.f32.mrf.mxu0
    %441 = vdwg.mxu0
    %442 = vmatprep.subr.bf16.mxu0 0
    %443 = vmatpush1.bf16.msra.mxu0 0
    %444 = vmatprep.subr.bf16.mxu0 0
    %445 = vmatpush1.bf16.msra.mxu0 0
    %446 = vmatprep.subr.bf16.mxu0 0
    %447 = vmatpush1.bf16.msra.mxu0 0
    %448 = vmatprep.subr.bf16.mxu0 0
    %449 = vmatpush1.bf16.msra.mxu0 0
    %450 = vmatprep.subr.bf16.mxu0 %v340
    %451 = vmatpush1.bf16.msra.mxu0 %v339
    %452 = vmatprep.subr.bf16.mxu0 %v328
    %453 = vmatpush1.bf16.msra.mxu0 %v327
    %454 = vmatprep.subr.bf16.mxu0 %v316
    %455 = vmatpush1.bf16.msra.mxu0 %v315
    %456 = vmatprep.subr.bf16.mxu0 %v304
    %457 = vmatpush1.bf16.msra.mxu0 %v303
    %458 = vmatprep.subr.bf16.mxu0 0
    %459 = vmatpush2.bf16.msra.mxu0 0
    %460 = vmatprep.subr.bf16.mxu0 0
    %461 = vmatpush2.bf16.msra.mxu0 0
    %462 = vmatprep.subr.bf16.mxu0 0
    %463 = vmatpush2.bf16.msra.mxu0 0
    %464 = vmatprep.subr.bf16.mxu0 0
    %465 = vmatpush2.bf16.msra.mxu0 0
    %466 = vmatprep.subr.bf16.mxu0 0
    %467 = vmatpush2.bf16.msra.mxu0 0
    %468 = vmatprep.subr.bf16.mxu0 0
    %469 = vmatpush2.bf16.msra.mxu0 0
    %470 = vmatprep.subr.bf16.mxu0 0
    %471 = vmatpush2.bf16.msra.mxu0 0
    %472 = vmatprep.subr.bf16.mxu0 0
    %473 = vmatpush2.bf16.msra.mxu0 0
    %474 = vmatprep.mubr.bf16.mxu0 0
    %475 = vmatmul.mubr.bf16.gmra.mxu0 %v399
    %v476 = vpop.f32.mrf.mxu0
    %v477 = vadd.f32 0.0, %v476
    %v478 = vpop.f32.mrf.mxu0
    %v479 = vadd.f32 0.0, %v478
    %v480 = vpop.f32.mrf.mxu0
    %v481 = vpop.f32.mrf.mxu0
    %482 = vdwg.mxu0
    %483 = vmatprep.subr.bf16.mxu0 0
    %484 = vmatpush1.bf16.msra.mxu0 0
    %485 = vmatprep.subr.bf16.mxu0 0
    %486 = vmatpush1.bf16.msra.mxu0 0
    %487 = vmatprep.subr.bf16.mxu0 0
    %488 = vmatpush1.bf16.msra.mxu0 0
    %489 = vmatprep.subr.bf16.mxu0 0
    %490 = vmatpush1.bf16.msra.mxu0 0
    %491 = vmatprep.subr.bf16.mxu0 %v342
    %492 = vmatpush1.bf16.msra.mxu0 %v341
    %493 = vmatprep.subr.bf16.mxu0 %v330
    %494 = vmatpush1.bf16.msra.mxu0 %v329
    %495 = vmatprep.subr.bf16.mxu0 %v318
    %496 = vmatpush1.bf16.msra.mxu0 %v317
    %497 = vmatprep.subr.bf16.mxu0 %v306
    %498 = vmatpush1.bf16.msra.mxu0 %v305
    %499 = vmatprep.subr.bf16.mxu0 0
    %500 = vmatpush2.bf16.msra.mxu0 0
    %501 = vmatprep.subr.bf16.mxu0 0
    %502 = vmatpush2.bf16.msra.mxu0 0
    %503 = vmatprep.subr.bf16.mxu0 0
    %504 = vmatpush2.bf16.msra.mxu0 0
    %505 = vmatprep.subr.bf16.mxu0 0
    %506 = vmatpush2.bf16.msra.mxu0 0
    %507 = vmatprep.subr.bf16.mxu0 0
    %508 = vmatpush2.bf16.msra.mxu0 0
    %509 = vmatprep.subr.bf16.mxu0 0
    %510 = vmatpush2.bf16.msra.mxu0 0
    %511 = vmatprep.subr.bf16.mxu0 0
    %512 = vmatpush2.bf16.msra.mxu0 0
    %513 = vmatprep.subr.bf16.mxu0 0
    %514 = vmatpush2.bf16.msra.mxu0 0
    %515 = vmatprep.mubr.bf16.mxu0 0
    %516 = vmatmul.mubr.bf16.gmra.mxu0 %v399
    %v517 = vpop.f32.mrf.mxu0
    %v518 = vadd.f32 0.0, %v517
    %v519 = vpop.f32.mrf.mxu0
    %v520 = vadd.f32 0.0, %v519
    %v521 = vpop.f32.mrf.mxu0
    %v522 = vpop.f32.mrf.mxu0
    %523 = vdwg.mxu0
    %524 = vmatprep.subr.bf16.mxu0 0
    %525 = vmatpush1.bf16.msra.mxu0 0
    %526 = vmatprep.subr.bf16.mxu0 0
    %527 = vmatpush1.bf16.msra.mxu0 0
    %528 = vmatprep.subr.bf16.mxu0 0
    %529 = vmatpush1.bf16.msra.mxu0 0
    %530 = vmatprep.subr.bf16.mxu0 0
    %531 = vmatpush1.bf16.msra.mxu0 0
    %532 = vmatprep.subr.bf16.mxu0 %v344
    %533 = vmatpush1.bf16.msra.mxu0 %v343
    %534 = vmatprep.subr.bf16.mxu0 %v332
    %535 = vmatpush1.bf16.msra.mxu0 %v331
    %536 = vmatprep.subr.bf16.mxu0 %v320
    %537 = vmatpush1.bf16.msra.mxu0 %v319
    %538 = vmatprep.subr.bf16.mxu0 %v308
    %539 = vmatpush1.bf16.msra.mxu0 %v307
    %540 = vmatprep.subr.bf16.mxu0 0
    %541 = vmatpush2.bf16.msra.mxu0 0
    %542 = vmatprep.subr.bf16.mxu0 0
    %543 = vmatpush2.bf16.msra.mxu0 0
    %544 = vmatprep.subr.bf16.mxu0 0
    %545 = vmatpush2.bf16.msra.mxu0 0
    %546 = vmatprep.subr.bf16.mxu0 0
    %547 = vmatpush2.bf16.msra.mxu0 0
    %548 = vmatprep.subr.bf16.mxu0 0
    %549 = vmatpush2.bf16.msra.mxu0 0
    %550 = vmatprep.subr.bf16.mxu0 0
    %551 = vmatpush2.bf16.msra.mxu0 0
    %552 = vmatprep.subr.bf16.mxu0 0
    %553 = vmatpush2.bf16.msra.mxu0 0
    %554 = vmatprep.subr.bf16.mxu0 0
    %555 = vmatpush2.bf16.msra.mxu0 0
    %556 = vmatprep.mubr.bf16.mxu0 0
    %557 = vmatmul.mubr.bf16.gmra.mxu0 %v399
    %v558 = vpop.f32.mrf.mxu0
    %v559 = vadd.f32 0.0, %v558
    %v560 = vpop.f32.mrf.mxu0
    %v561 = vadd.f32 0.0, %v560
    %v562 = vpop.f32.mrf.mxu0
    %v563 = vpop.f32.mrf.mxu0
    %564 = vdwg.mxu0
    %565 = vmatprep.subr.bf16.mxu0 0
    %566 = vmatpush1.bf16.msra.mxu0 0
    %567 = vmatprep.subr.bf16.mxu0 0
    %568 = vmatpush1.bf16.msra.mxu0 0
    %569 = vmatprep.subr.bf16.mxu0 0
    %570 = vmatpush1.bf16.msra.mxu0 0
    %571 = vmatprep.subr.bf16.mxu0 0
    %572 = vmatpush1.bf16.msra.mxu0 0
    %573 = vmatprep.subr.bf16.mxu0 %v346
    %574 = vmatpush1.bf16.msra.mxu0 %v345
    %575 = vmatprep.subr.bf16.mxu0 %v334
    %576 = vmatpush1.bf16.msra.mxu0 %v333
    %577 = vmatprep.subr.bf16.mxu0 %v322
    %578 = vmatpush1.bf16.msra.mxu0 %v321
    %579 = vmatprep.subr.bf16.mxu0 %v310
    %580 = vmatpush1.bf16.msra.mxu0 %v309
    %581 = vmatprep.subr.bf16.mxu0 0
    %582 = vmatpush2.bf16.msra.mxu0 0
    %583 = vmatprep.subr.bf16.mxu0 0
    %584 = vmatpush2.bf16.msra.mxu0 0
    %585 = vmatprep.subr.bf16.mxu0 0
    %586 = vmatpush2.bf16.msra.mxu0 0
    %587 = vmatprep.subr.bf16.mxu0 0
    %588 = vmatpush2.bf16.msra.mxu0 0
    %589 = vmatprep.subr.bf16.mxu0 0
    %590 = vmatpush2.bf16.msra.mxu0 0
    %591 = vmatprep.subr.bf16.mxu0 0
    %592 = vmatpush2.bf16.msra.mxu0 0
    %593 = vmatprep.subr.bf16.mxu0 0
    %594 = vmatpush2.bf16.msra.mxu0 0
    %595 = vmatprep.subr.bf16.mxu0 0
    %596 = vmatpush2.bf16.msra.mxu0 0
    %597 = vmatprep.mubr.bf16.mxu0 0
    %598 = vmatmul.mubr.bf16.gmra.mxu0 %v399
    %v599 = vpop.f32.mrf.mxu0
    %v600 = vadd.f32 0.0, %v599
    %v601 = vpop.f32.mrf.mxu0
    %v602 = vadd.f32 0.0, %v601
    %v603 = vpop.f32.mrf.mxu0
    %v604 = vpop.f32.mrf.mxu0
    %605 = vdwg.mxu0
    %606 = vmatprep.subr.bf16.mxu0 0
    %607 = vmatpush1.bf16.msra.mxu0 0
    %608 = vmatprep.subr.bf16.mxu0 0
    %609 = vmatpush1.bf16.msra.mxu0 0
    %610 = vmatprep.subr.bf16.mxu0 0
    %611 = vmatpush1.bf16.msra.mxu0 0
    %612 = vmatprep.subr.bf16.mxu0 0
    %613 = vmatpush1.bf16.msra.mxu0 0
    %614 = vmatprep.subr.bf16.mxu0 %v348
    %615 = vmatpush1.bf16.msra.mxu0 %v347
    %616 = vmatprep.subr.bf16.mxu0 %v336
    %617 = vmatpush1.bf16.msra.mxu0 %v335
    %618 = vmatprep.subr.bf16.mxu0 %v324
    %619 = vmatpush1.bf16.msra.mxu0 %v323
    %620 = vmatprep.subr.bf16.mxu0 %v312
    %621 = vmatpush1.bf16.msra.mxu0 %v311
    %622 = vmatprep.subr.bf16.mxu0 0
    %623 = vmatpush2.bf16.msra.mxu0 0
    %624 = vmatprep.subr.bf16.mxu0 0
    %625 = vmatpush2.bf16.msra.mxu0 0
    %626 = vmatprep.subr.bf16.mxu0 0
    %627 = vmatpush2.bf16.msra.mxu0 0
    %628 = vmatprep.subr.bf16.mxu0 0
    %629 = vmatpush2.bf16.msra.mxu0 0
    %630 = vmatprep.subr.bf16.mxu0 0
    %631 = vmatpush2.bf16.msra.mxu0 0
    %632 = vmatprep.subr.bf16.mxu0 0
    %633 = vmatpush2.bf16.msra.mxu0 0
    %634 = vmatprep.subr.bf16.mxu0 0
    %635 = vmatpush2.bf16.msra.mxu0 0
    %636 = vmatprep.subr.bf16.mxu0 0
    %637 = vmatpush2.bf16.msra.mxu0 0
    %638 = vmatprep.mubr.bf16.mxu0 0
    %639 = vmatmul.mubr.bf16.gmra.mxu0 %v399
    %v640 = vpop.f32.mrf.mxu0
    %v641 = vadd.f32 0.0, %v640
    %v642 = vpop.f32.mrf.mxu0
    %v643 = vadd.f32 0.0, %v642
    %v644 = vpop.f32.mrf.mxu0
    %v645 = vpop.f32.mrf.mxu0
    %646 = vdwg.mxu0
    %v647 = vmax.f32 %v436, %v479
    %v648 = vmax.f32 %v438, %v518
    %v649 = vmax.f32 %v477, %v520
    %v650 = vmax.f32 %v647, %v559
    %v651 = vmax.f32 %v648, %v561
    %v652 = vmax.f32 %v649, %v600
    %v653 = vmax.f32 %v650, %v602
    %v654 = vmax.f32 %v651, %v641
    %v655 = vmax.f32 %v652, %v643
    %v656 = vld [vmem:[%s2] sm:$0x7]
    %v658 = vlaneseq
    %v659 = vshrl.u32 %v658, 7
    %v660 = vsub.s32 0, %v659
    %v661 = vrot.slane %v656, %v660
    %v662 = vlaneseq
    %v663 = vshrl.u32 %v662, 7
    %v664 = vsub.s32 1, %v663
    %v665 = vrot.slane %v656, %v664
    %v666 = vlaneseq
    %v667 = vshrl.u32 %v666, 7
    %v668 = vsub.s32 2, %v667
    %v669 = vrot.slane %v656, %v668
    %v673 = vadd.f32 %v653, %v661
    %v674 = vadd.f32 %v654, %v665
    %v675 = vadd.f32 %v655, %v669
    %v676 = vmax.f32 %v673, 0.0
    %v677 = vmax.f32 %v674, 0.0
    %v678 = vmax.f32 %v675, 0.0
    %v679 = vpack.c.bf16 %v676, %v676
    %v680 = vpack.c.bf16 %v677, %v677
    %v681 = vpack.c.bf16 %v678, %v678
    %v682 = vld [vmem:[#allocation5] sm:$0xf]
    %v683 = vld [vmem:[#allocation5 + $0x4] sm:$0xf]
    %v684 = vld [vmem:[#allocation5 + $0x8] sm:$0xf]
    %v685 = vld [vmem:[#allocation5 + $0xc] sm:$0xf]
    %v686 = vld [vmem:[#allocation5 + $0x10] sm:$0xf]
    %v687 = vld [vmem:[#allocation5 + $0x14] sm:$0xf]
    %v688 = vld [vmem:[#allocation5 + $0x18] sm:$0xf]
    %v689 = vld [vmem:[#allocation5 + $0x1c] sm:$0xf]
    %v690 = vld [vmem:[#allocation5 + $0x20] sm:$0xf]
    %v691 = vld [vmem:[#allocation5 + $0x24] sm:$0xf]
    %v692 = vld [vmem:[#allocation5 + $0x28] sm:$0xf]
    %v693 = vld [vmem:[#allocation5 + $0x2c] sm:$0xf]
    %v694 = vld [vmem:[#allocation5 + $0x30] sm:$0xf]
    %v695 = vld [vmem:[#allocation5 + $0x34] sm:$0xf]
    %v696 = vld [vmem:[#allocation5 + $0x38] sm:$0xf]
    %v697 = vld [vmem:[#allocation5 + $0x3c] sm:$0xf]
    %v698 = vld [vmem:[#allocation5 + $0x40] sm:$0xf]
    %v699 = vld [vmem:[#allocation5 + $0x44] sm:$0xf]
    %v700 = vld [vmem:[#allocation5 + $0x48] sm:$0xf]
    %v701 = vld [vmem:[#allocation5 + $0x4c] sm:$0xf]
    %v702 = vld [vmem:[#allocation5 + $0x50] sm:$0xf]
    %v703 = vld [vmem:[#allocation5 + $0x54] sm:$0xf]
    %v704 = vld [vmem:[#allocation5 + $0x58] sm:$0xf]
    %v705 = vld [vmem:[#allocation5 + $0x5c] sm:$0xf]
    %v706 = vld [vmem:[#allocation5 + $0x60] sm:$0xf]
    %v707 = vld [vmem:[#allocation5 + $0x64] sm:$0xf]
    %v708 = vld [vmem:[#allocation5 + $0x68] sm:$0xf]
    %v709 = vld [vmem:[#allocation5 + $0x6c] sm:$0xf]
    %v710 = vld [vmem:[#allocation5 + $0x70] sm:$0xf]
    %v711 = vld [vmem:[#allocation5 + $0x74] sm:$0xf]
    %v712 = vld [vmem:[#allocation5 + $0x78] sm:$0xf]
    %v713 = vld [vmem:[#allocation5 + $0x7c] sm:$0xf]
    %v714 = vld [vmem:[#allocation5 + $0x80] sm:$0xf]
    %v715 = vld [vmem:[#allocation5 + $0x84] sm:$0xf]
    %v716 = vld [vmem:[#allocation5 + $0x88] sm:$0xf]
    %v717 = vld [vmem:[#allocation5 + $0x8c] sm:$0xf]
    %v718 = vld [vmem:[#allocation5 + $0x90] sm:$0xf]
    %v719 = vld [vmem:[#allocation5 + $0x94] sm:$0xf]
    %v720 = vld [vmem:[#allocation5 + $0x98] sm:$0xf]
    %v721 = vld [vmem:[#allocation5 + $0x9c] sm:$0xf]
    %v722 = vld [vmem:[#allocation5 + $0xa0] sm:$0xf]
    %v723 = vld [vmem:[#allocation5 + $0xa4] sm:$0xf]
    %v724 = vld [vmem:[#allocation5 + $0xa8] sm:$0xf]
    %v725 = vld [vmem:[#allocation5 + $0xac] sm:$0xf]
    %v726 = vld [vmem:[#allocation5 + $0xb0] sm:$0xf]
    %v727 = vld [vmem:[#allocation5 + $0xb4] sm:$0xf]
    %v728 = vld [vmem:[#allocation5 + $0xb8] sm:$0xf]
    %v729 = vld [vmem:[#allocation5 + $0xbc] sm:$0xf]
    %v730 = vld [vmem:[%s4] sm:$0x1]
    %v732 = vlaneseq
    %v733 = vshrl.u32 %v732, 7
    %v734 = vsub.s32 0, %v733
    %v735 = vrot.slane %v730, %v734
    %v785 = vunpack.c.l.b16 %v682
    %v786 = vunpack.c.l.b16 %v683
    %v787 = vunpack.c.l.b16 %v684
    %v788 = vunpack.c.l.b16 %v685
    %v789 = vunpack.c.l.b16 %v686
    %v790 = vunpack.c.l.b16 %v687
    %v791 = vunpack.c.l.b16 %v688
    %v792 = vunpack.c.l.b16 %v689
    %v793 = vunpack.c.l.b16 %v690
    %v794 = vunpack.c.l.b16 %v691
    %v795 = vunpack.c.l.b16 %v692
    %v796 = vunpack.c.l.b16 %v693
    %v797 = vunpack.c.l.b16 %v694
    %v798 = vunpack.c.l.b16 %v695
    %v799 = vunpack.c.l.b16 %v696
    %v800 = vunpack.c.l.b16 %v697
    %v801 = vunpack.c.l.b16 %v698
    %v802 = vunpack.c.l.b16 %v699
    %v803 = vunpack.c.l.b16 %v700
    %v804 = vunpack.c.l.b16 %v701
    %v805 = vunpack.c.l.b16 %v702
    %v806 = vunpack.c.l.b16 %v703
    %v807 = vunpack.c.l.b16 %v704
    %v808 = vunpack.c.l.b16 %v705
    %v809 = vunpack.c.l.b16 %v706
    %v810 = vunpack.c.l.b16 %v707
    %v811 = vunpack.c.l.b16 %v708
    %v812 = vunpack.c.l.b16 %v709
    %v813 = vunpack.c.l.b16 %v710
    %v814 = vunpack.c.l.b16 %v711
    %v815 = vunpack.c.l.b16 %v712
    %v816 = vunpack.c.l.b16 %v713
    %v817 = vunpack.c.l.b16 %v714
    %v818 = vunpack.c.l.b16 %v715
    %v819 = vunpack.c.l.b16 %v716
    %v820 = vunpack.c.l.b16 %v717
    %v821 = vunpack.c.l.b16 %v718
    %v822 = vunpack.c.l.b16 %v719
    %v823 = vunpack.c.l.b16 %v720
    %v824 = vunpack.c.l.b16 %v721
    %v825 = vunpack.c.l.b16 %v722
    %v826 = vunpack.c.l.b16 %v723
    %v827 = vunpack.c.l.b16 %v724
    %v828 = vunpack.c.l.b16 %v725
    %v829 = vunpack.c.l.b16 %v726
    %v830 = vunpack.c.l.b16 %v727
    %v831 = vunpack.c.l.b16 %v728
    %v832 = vunpack.c.l.b16 %v729
    %v833 = vpack.c.b16 %v786, %v785
    %v834 = vpack.c.b16 %v788, %v787
    %v835 = vpack.c.b16 %v790, %v789
    %v836 = vpack.c.b16 %v792, %v791
    %v837 = vpack.c.b16 %v794, %v793
    %v838 = vpack.c.b16 %v796, %v795
    %v839 = vpack.c.b16 %v798, %v797
    %v840 = vpack.c.b16 %v800, %v799
    %v841 = vpack.c.b16 %v802, %v801
    %v842 = vpack.c.b16 %v804, %v803
    %v843 = vpack.c.b16 %v806, %v805
    %v844 = vpack.c.b16 %v808, %v807
    %v845 = vpack.c.b16 %v810, %v809
    %v846 = vpack.c.b16 %v812, %v811
    %v847 = vpack.c.b16 %v814, %v813
    %v848 = vpack.c.b16 %v816, %v815
    %v849 = vpack.c.b16 %v818, %v817
    %v850 = vpack.c.b16 %v820, %v819
    %v851 = vpack.c.b16 %v822, %v821
    %v852 = vpack.c.b16 %v824, %v823
    %v853 = vpack.c.b16 %v826, %v825
    %v854 = vpack.c.b16 %v828, %v827
    %v855 = vpack.c.b16 %v830, %v829
    %v856 = vpack.c.b16 %v832, %v831
    %881 = vmatprep.subr.bf16.mxu0 0
    %882 = vmatpush1.bf16.msra.mxu0 %v840
    %883 = vmatprep.subr.bf16.mxu0 0
    %884 = vmatpush1.bf16.msra.mxu0 %v839
    %885 = vmatprep.subr.bf16.mxu0 0
    %886 = vmatpush1.bf16.msra.mxu0 %v838
    %887 = vmatprep.subr.bf16.mxu0 0
    %888 = vmatpush1.bf16.msra.mxu0 %v837
    %889 = vmatprep.subr.bf16.mxu0 0
    %890 = vmatpush1.bf16.msra.mxu0 %v836
    %891 = vmatprep.subr.bf16.mxu0 0
    %892 = vmatpush1.bf16.msra.mxu0 %v835
    %893 = vmatprep.subr.bf16.mxu0 0
    %894 = vmatpush1.bf16.msra.mxu0 %v834
    %895 = vmatprep.subr.bf16.mxu0 0
    %896 = vmatpush1.bf16.msra.mxu0 %v833
    %897 = vmatprep.subr.bf16.mxu0 0
    %898 = vmatpush2.bf16.msra.mxu0 %v848
    %899 = vmatprep.subr.bf16.mxu0 0
    %900 = vmatpush2.bf16.msra.mxu0 %v847
    %901 = vmatprep.subr.bf16.mxu0 0
    %902 = vmatpush2.bf16.msra.mxu0 %v846
    %903 = vmatprep.subr.bf16.mxu0 0
    %904 = vmatpush2.bf16.msra.mxu0 %v845
    %905 = vmatprep.subr.bf16.mxu0 0
    %906 = vmatpush2.bf16.msra.mxu0 %v844
    %907 = vmatprep.subr.bf16.mxu0 0
    %908 = vmatpush2.bf16.msra.mxu0 %v843
    %909 = vmatprep.subr.bf16.mxu0 0
    %910 = vmatpush2.bf16.msra.mxu0 %v842
    %911 = vmatprep.subr.bf16.mxu0 0
    %912 = vmatpush2.bf16.msra.mxu0 %v841
    %913 = vmatprep.mubr.bf16.mxu0 %v680
    %914 = vmatmul.mubr.bf16.gmra.mxu0 %v679
    %v915 = vpop.f32.mrf.mxu0
    %v916 = vadd.f32 %v735, %v915
    %v917 = vpop.f32.mrf.mxu0
    %v918 = vpop.f32.mrf.mxu0
    %v919 = vpop.f32.mrf.mxu0
    %920 = vdwg.mxu0
    %921 = vmatprep.subr.bf16.mxu0 0
    %922 = vmatpush1.bf16.msra.mxu0 %v856
    %923 = vmatprep.subr.bf16.mxu0 0
    %924 = vmatpush1.bf16.msra.mxu0 %v855
    %925 = vmatprep.subr.bf16.mxu0 0
    %926 = vmatpush1.bf16.msra.mxu0 %v854
    %927 = vmatprep.subr.bf16.mxu0 0
    %928 = vmatpush1.bf16.msra.mxu0 %v853
    %929 = vmatprep.subr.bf16.mxu0 0
    %930 = vmatpush1.bf16.msra.mxu0 %v852
    %931 = vmatprep.subr.bf16.mxu0 0
    %932 = vmatpush1.bf16.msra.mxu0 %v851
    %933 = vmatprep.subr.bf16.mxu0 0
    %934 = vmatpush1.bf16.msra.mxu0 %v850
    %935 = vmatprep.subr.bf16.mxu0 0
    %936 = vmatpush1.bf16.msra.mxu0 %v849
    %937 = vmatprep.subr.bf16.mxu0 0
    %938 = vmatpush2.bf16.msra.mxu0 0
    %939 = vmatprep.subr.bf16.mxu0 0
    %940 = vmatpush2.bf16.msra.mxu0 0
    %941 = vmatprep.subr.bf16.mxu0 0
    %942 = vmatpush2.bf16.msra.mxu0 0
    %943 = vmatprep.subr.bf16.mxu0 0
    %944 = vmatpush2.bf16.msra.mxu0 0
    %945 = vmatprep.subr.bf16.mxu0 0
    %946 = vmatpush2.bf16.msra.mxu0 0
    %947 = vmatprep.subr.bf16.mxu0 0
    %948 = vmatpush2.bf16.msra.mxu0 0
    %949 = vmatprep.subr.bf16.mxu0 0
    %950 = vmatpush2.bf16.msra.mxu0 0
    %951 = vmatprep.subr.bf16.mxu0 0
    %952 = vmatpush2.bf16.msra.mxu0 0
    %953 = vmatprep.mubr.bf16.mxu0 0
    %954 = vmatmul.mubr.bf16.gmra.mxu0 %v681
    %v955 = vpop.f32.mrf.mxu0
    %v956 = vadd.f32 %v916, %v955
    %v957 = vpop.f32.mrf.mxu0
    %v958 = vpop.f32.mrf.mxu0
    %v959 = vpop.f32.mrf.mxu0
    %960 = vdwg.mxu0
    %v961 = vmax.f32 %v956, 0.0
    %v962 = vpack.c.bf16 %v961, %v961
    %v963 = vld [vmem:[#allocation7] sm:$0xff]
    %v964 = vld [vmem:[#allocation7 + $0x8] sm:$0xff]
    %v965 = vld [vmem:[#allocation7 + $0x10] sm:$0xff]
    %v966 = vld [vmem:[#allocation7 + $0x18] sm:$0xff]
    %v967 = vld [vmem:[#allocation7 + $0x20] sm:$0xff]
    %v968 = vld [vmem:[#allocation7 + $0x28] sm:$0xff]
    %v969 = vld [vmem:[#allocation7 + $0x30] sm:$0xff]
    %v970 = vld [vmem:[#allocation7 + $0x38] sm:$0xff]
    %v971 = vld [vmem:[#allocation7 + $0x40] sm:$0xff]
    %v972 = vld [vmem:[#allocation7 + $0x48] sm:$0xff]
    %v973 = vld [vmem:[#allocation7 + $0x50] sm:$0xff]
    %v974 = vld [vmem:[#allocation7 + $0x58] sm:$0xff]
    %v975 = vld [vmem:[#allocation7 + $0x60] sm:$0xff]
    %v976 = vld [vmem:[#allocation7 + $0x68] sm:$0xff]
    %v977 = vld [vmem:[#allocation7 + $0x70] sm:$0xff]
    %v978 = vld [vmem:[#allocation7 + $0x78] sm:$0xff]
    %v979 = vld [vmem:[%s6] sm:$0xf]
    %v981 = vlaneseq
    %v982 = vshrl.u32 %v981, 7
    %v983 = vsub.s32 0, %v982
    %v984 = vrot.slane %v979, %v983
    %v985 = vlaneseq
    %v986 = vshrl.u32 %v985, 7
    %v987 = vsub.s32 1, %v986
    %v988 = vrot.slane %v979, %v987
    %v989 = vlaneseq
    %v990 = vshrl.u32 %v989, 7
    %v991 = vsub.s32 2, %v990
    %v992 = vrot.slane %v979, %v991
    %v993 = vlaneseq
    %v994 = vshrl.u32 %v993, 7
    %v995 = vsub.s32 3, %v994
    %v996 = vrot.slane %v979, %v995
    %v1017 = vunpack.c.l.b16 %v963
    %v1018 = vunpack.c.h.b16 %v963
    %v1019 = vunpack.c.l.b16 %v964
    %v1020 = vunpack.c.h.b16 %v964
    %v1021 = vunpack.c.l.b16 %v965
    %v1022 = vunpack.c.h.b16 %v965
    %v1023 = vunpack.c.l.b16 %v966
    %v1024 = vunpack.c.h.b16 %v966
    %v1025 = vunpack.c.l.b16 %v967
    %v1026 = vunpack.c.h.b16 %v967
    %v1027 = vunpack.c.l.b16 %v968
    %v1028 = vunpack.c.h.b16 %v968
    %v1029 = vunpack.c.l.b16 %v969
    %v1030 = vunpack.c.h.b16 %v969
    %v1031 = vunpack.c.l.b16 %v970
    %v1032 = vunpack.c.h.b16 %v970
    %v1033 = vunpack.c.l.b16 %v971
    %v1034 = vunpack.c.h.b16 %v971
    %v1035 = vunpack.c.l.b16 %v972
    %v1036 = vunpack.c.h.b16 %v972
    %v1037 = vunpack.c.l.b16 %v973
    %v1038 = vunpack.c.h.b16 %v973
    %v1039 = vunpack.c.l.b16 %v974
    %v1040 = vunpack.c.h.b16 %v974
    %v1041 = vunpack.c.l.b16 %v975
    %v1042 = vunpack.c.h.b16 %v975
    %v1043 = vunpack.c.l.b16 %v976
    %v1044 = vunpack.c.h.b16 %v976
    %v1045 = vunpack.c.l.b16 %v977
    %v1046 = vunpack.c.h.b16 %v977
    %v1047 = vunpack.c.l.b16 %v978
    %v1048 = vunpack.c.h.b16 %v978
    %v1049 = vpack.c.b16 %v1021, %v1017
    %v1050 = vpack.c.b16 %v1022, %v1018
    %v1051 = vpack.c.b16 %v1023, %v1019
    %v1052 = vpack.c.b16 %v1024, %v1020
    %v1053 = vpack.c.b16 %v1029, %v1025
    %v1054 = vpack.c.b16 %v1030, %v1026
    %v1055 = vpack.c.b16 %v1031, %v1027
    %v1056 = vpack.c.b16 %v1032, %v1028
    %v1057 = vpack.c.b16 %v1037, %v1033
    %v1058 = vpack.c.b16 %v1038, %v1034
    %v1059 = vpack.c.b16 %v1039, %v1035
    %v1060 = vpack.c.b16 %v1040, %v1036
    %v1061 = vpack.c.b16 %v1045, %v1041
    %v1062 = vpack.c.b16 %v1046, %v1042
    %v1063 = vpack.c.b16 %v1047, %v1043
    %v1064 = vpack.c.b16 %v1048, %v1044
    %v1082 = vsel %vm397, %v962, 0
    %1084 = vmatprep.subr.bf16.mxu0 0
    %1085 = vmatpush1.bf16.msra.mxu0 0
    %1086 = vmatprep.subr.bf16.mxu0 0
    %1087 = vmatpush1.bf16.msra.mxu0 0
    %1088 = vmatprep.subr.bf16.mxu0 0
    %1089 = vmatpush1.bf16.msra.mxu0 0
    %1090 = vmatprep.subr.bf16.mxu0 0
    %1091 = vmatpush1.bf16.msra.mxu0 0
    %1092 = vmatprep.subr.bf16.mxu0 %v1062
    %1093 = vmatpush1.bf16.msra.mxu0 %v1061
    %1094 = vmatprep.subr.bf16.mxu0 %v1058
    %1095 = vmatpush1.bf16.msra.mxu0 %v1057
    %1096 = vmatprep.subr.bf16.mxu0 %v1054
    %1097 = vmatpush1.bf16.msra.mxu0 %v1053
    %1098 = vmatprep.subr.bf16.mxu0 %v1050
    %1099 = vmatpush1.bf16.msra.mxu0 %v1049
    %1100 = vmatprep.subr.bf16.mxu0 0
    %1101 = vmatpush2.bf16.msra.mxu0 0
    %1102 = vmatprep.subr.bf16.mxu0 0
    %1103 = vmatpush2.bf16.msra.mxu0 0
    %1104 = vmatprep.subr.bf16.mxu0 0
    %1105 = vmatpush2.bf16.msra.mxu0 0
    %1106 = vmatprep.subr.bf16.mxu0 0
    %1107 = vmatpush2.bf16.msra.mxu0 0
    %1108 = vmatprep.subr.bf16.mxu0 0
    %1109 = vmatpush2.bf16.msra.mxu0 0
    %1110 = vmatprep.subr.bf16.mxu0 0
    %1111 = vmatpush2.bf16.msra.mxu0 0
    %1112 = vmatprep.subr.bf16.mxu0 0
    %1113 = vmatpush2.bf16.msra.mxu0 0
    %1114 = vmatprep.subr.bf16.mxu0 0
    %1115 = vmatpush2.bf16.msra.mxu0 0
    %1116 = vmatprep.mubr.bf16.mxu0 0
    %1117 = vmatmul.mubr.bf16.gmra.mxu0 %v1082
    %v1118 = vpop.f32.mrf.mxu0
    %v1119 = vadd.f32 %v984, %v1118
    %v1120 = vpop.f32.mrf.mxu0
    %v1121 = vadd.f32 %v988, %v1120
    %v1122 = vpop.f32.mrf.mxu0
    %v1123 = vpop.f32.mrf.mxu0
    %1124 = vdwg.mxu0
    %1125 = vmatprep.subr.bf16.mxu0 0
    %1126 = vmatpush1.bf16.msra.mxu0 0
    %1127 = vmatprep.subr.bf16.mxu0 0
    %1128 = vmatpush1.bf16.msra.mxu0 0
    %1129 = vmatprep.subr.bf16.mxu0 0
    %1130 = vmatpush1.bf16.msra.mxu0 0
    %1131 = vmatprep.subr.bf16.mxu0 0
    %1132 = vmatpush1.bf16.msra.mxu0 0
    %1133 = vmatprep.subr.bf16.mxu0 %v1064
    %1134 = vmatpush1.bf16.msra.mxu0 %v1063
    %1135 = vmatprep.subr.bf16.mxu0 %v1060
    %1136 = vmatpush1.bf16.msra.mxu0 %v1059
    %1137 = vmatprep.subr.bf16.mxu0 %v1056
    %1138 = vmatpush1.bf16.msra.mxu0 %v1055
    %1139 = vmatprep.subr.bf16.mxu0 %v1052
    %1140 = vmatpush1.bf16.msra.mxu0 %v1051
    %1141 = vmatprep.subr.bf16.mxu0 0
    %1142 = vmatpush2.bf16.msra.mxu0 0
    %1143 = vmatprep.subr.bf16.mxu0 0
    %1144 = vmatpush2.bf16.msra.mxu0 0
    %1145 = vmatprep.subr.bf16.mxu0 0
    %1146 = vmatpush2.bf16.msra.mxu0 0
    %1147 = vmatprep.subr.bf16.mxu0 0
    %1148 = vmatpush2.bf16.msra.mxu0 0
    %1149 = vmatprep.subr.bf16.mxu0 0
    %1150 = vmatpush2.bf16.msra.mxu0 0
    %1151 = vmatprep.subr.bf16.mxu0 0
    %1152 = vmatpush2.bf16.msra.mxu0 0
    %1153 = vmatprep.subr.bf16.mxu0 0
    %1154 = vmatpush2.bf16.msra.mxu0 0
    %1155 = vmatprep.subr.bf16.mxu0 0
    %1156 = vmatpush2.bf16.msra.mxu0 0
    %1157 = vmatprep.mubr.bf16.mxu0 0
    %1158 = vmatmul.mubr.bf16.gmra.mxu0 %v1082
    %v1159 = vpop.f32.mrf.mxu0
    %v1160 = vadd.f32 %v992, %v1159
    %v1161 = vpop.f32.mrf.mxu0
    %v1162 = vadd.f32 %v996, %v1161
    %v1163 = vpop.f32.mrf.mxu0
    %v1164 = vpop.f32.mrf.mxu0
    %1165 = vdwg.mxu0
    %v1166 = vmax.f32 %v1119, 0.0
    %v1167 = vmax.f32 %v1121, 0.0
    %v1168 = vmax.f32 %v1160, 0.0
    %v1169 = vmax.f32 %v1162, 0.0
    %v1170 = vpack.c.bf16 %v1166, %v1166
    %v1171 = vpack.c.bf16 %v1167, %v1167
    %v1172 = vpack.c.bf16 %v1168, %v1168
    %v1173 = vpack.c.bf16 %v1169, %v1169
    %v1174 = vld [vmem:[#allocation8] sm:$0xff]
    %v1175 = vld [vmem:[#allocation8 + $0x8] sm:$0xff]
    %v1176 = vld [vmem:[#allocation8 + $0x10] sm:$0xff]
    %v1177 = vld [vmem:[#allocation8 + $0x18] sm:$0xff]
    %v1178 = vld [vmem:[#allocation8 + $0x20] sm:$0xff]
    %v1179 = vld [vmem:[#allocation8 + $0x28] sm:$0xff]
    %v1180 = vld [vmem:[#allocation8 + $0x30] sm:$0xff]
    %v1181 = vld [vmem:[#allocation8 + $0x38] sm:$0xff]
    %v1182 = vld [vmem:[#allocation8 + $0x40] sm:$0xff]
    %v1183 = vld [vmem:[#allocation8 + $0x48] sm:$0xff]
    %v1184 = vld [vmem:[#allocation8 + $0x50] sm:$0xff]
    %v1185 = vld [vmem:[#allocation8 + $0x58] sm:$0xff]
    %v1186 = vld [vmem:[#allocation8 + $0x60] sm:$0xff]
    %v1187 = vld [vmem:[#allocation8 + $0x68] sm:$0xff]
    %v1188 = vld [vmem:[#allocation8 + $0x70] sm:$0xff]
    %v1189 = vld [vmem:[#allocation8 + $0x78] sm:$0xff]
    %v1190 = vld [vmem:[#allocation8 + $0x80] sm:$0xff]
    %v1191 = vld [vmem:[#allocation8 + $0x88] sm:$0xff]
    %v1192 = vld [vmem:[#allocation8 + $0x90] sm:$0xff]
    %v1193 = vld [vmem:[#allocation8 + $0x98] sm:$0xff]
    %v1194 = vld [vmem:[#allocation8 + $0xa0] sm:$0xff]
    %v1195 = vld [vmem:[#allocation8 + $0xa8] sm:$0xff]
    %v1196 = vld [vmem:[#allocation8 + $0xb0] sm:$0xff]
    %v1197 = vld [vmem:[#allocation8 + $0xb8] sm:$0xff]
    %v1198 = vld [vmem:[#allocation8 + $0xc0] sm:$0xff]
    %v1199 = vld [vmem:[#allocation8 + $0xc8] sm:$0xff]
    %v1200 = vld [vmem:[#allocation8 + $0xd0] sm:$0xff]
    %v1201 = vld [vmem:[#allocation8 + $0xd8] sm:$0xff]
    %v1202 = vld [vmem:[#allocation8 + $0xe0] sm:$0xff]
    %v1203 = vld [vmem:[#allocation8 + $0xe8] sm:$0xff]
    %v1204 = vld [vmem:[#allocation8 + $0xf0] sm:$0xff]
    %v1205 = vld [vmem:[#allocation8 + $0xf8] sm:$0xff]
    %v1206 = vld [vmem:[#allocation8 + $0x100] sm:$0xff]
    %v1207 = vld [vmem:[#allocation8 + $0x108] sm:$0xff]
    %v1208 = vld [vmem:[#allocation8 + $0x110] sm:$0xff]
    %v1209 = vld [vmem:[#allocation8 + $0x118] sm:$0xff]
    %v1210 = vld [vmem:[#allocation8 + $0x120] sm:$0xff]
    %v1211 = vld [vmem:[#allocation8 + $0x128] sm:$0xff]
    %v1212 = vld [vmem:[#allocation8 + $0x130] sm:$0xff]
    %v1213 = vld [vmem:[#allocation8 + $0x138] sm:$0xff]
    %v1214 = vld [vmem:[#allocation8 + $0x140] sm:$0xff]
    %v1215 = vld [vmem:[#allocation8 + $0x148] sm:$0xff]
    %v1216 = vld [vmem:[#allocation8 + $0x150] sm:$0xff]
    %v1217 = vld [vmem:[#allocation8 + $0x158] sm:$0xff]
    %v1218 = vld [vmem:[#allocation8 + $0x160] sm:$0xff]
    %v1219 = vld [vmem:[#allocation8 + $0x168] sm:$0xff]
    %v1220 = vld [vmem:[#allocation8 + $0x170] sm:$0xff]
    %v1221 = vld [vmem:[#allocation8 + $0x178] sm:$0xff]
    %v1222 = vld [vmem:[#allocation8 + $0x180] sm:$0xff]
    %v1223 = vld [vmem:[#allocation8 + $0x188] sm:$0xff]
    %v1224 = vld [vmem:[#allocation8 + $0x190] sm:$0xff]
    %v1225 = vld [vmem:[#allocation8 + $0x198] sm:$0xff]
    %v1226 = vld [vmem:[#allocation8 + $0x1a0] sm:$0xff]
    %v1227 = vld [vmem:[#allocation8 + $0x1a8] sm:$0xff]
    %v1228 = vld [vmem:[#allocation8 + $0x1b0] sm:$0xff]
    %v1229 = vld [vmem:[#allocation8 + $0x1b8] sm:$0xff]
    %v1230 = vld [vmem:[#allocation8 + $0x1c0] sm:$0xff]
    %v1231 = vld [vmem:[#allocation8 + $0x1c8] sm:$0xff]
    %v1232 = vld [vmem:[#allocation8 + $0x1d0] sm:$0xff]
    %v1233 = vld [vmem:[#allocation8 + $0x1d8] sm:$0xff]
    %v1234 = vld [vmem:[#allocation8 + $0x1e0] sm:$0xff]
    %v1235 = vld [vmem:[#allocation8 + $0x1e8] sm:$0xff]
    %v1236 = vld [vmem:[#allocation8 + $0x1f0] sm:$0xff]
    %v1237 = vld [vmem:[#allocation8 + $0x1f8] sm:$0xff]
    %v1238 = vld [vmem:[%s8] sm:$0x3]
    %v1240 = vlaneseq
    %v1241 = vshrl.u32 %v1240, 7
    %v1242 = vsub.s32 0, %v1241
    %v1243 = vrot.slane %v1238, %v1242
    %v1244 = vlaneseq
    %v1245 = vshrl.u32 %v1244, 7
    %v1246 = vsub.s32 1, %v1245
    %v1247 = vrot.slane %v1238, %v1246
    %v1314 = vunpack.c.l.b16 %v1174
    %v1315 = vunpack.c.h.b16 %v1174
    %v1316 = vunpack.c.l.b16 %v1175
    %v1317 = vunpack.c.h.b16 %v1175
    %v1318 = vunpack.c.l.b16 %v1176
    %v1319 = vunpack.c.h.b16 %v1176
    %v1320 = vunpack.c.l.b16 %v1177
    %v1321 = vunpack.c.h.b16 %v1177
    %v1322 = vunpack.c.l.b16 %v1178
    %v1323 = vunpack.c.h.b16 %v1178
    %v1324 = vunpack.c.l.b16 %v1179
    %v1325 = vunpack.c.h.b16 %v1179
    %v1326 = vunpack.c.l.b16 %v1180
    %v1327 = vunpack.c.h.b16 %v1180
    %v1328 = vunpack.c.l.b16 %v1181
    %v1329 = vunpack.c.h.b16 %v1181
    %v1330 = vunpack.c.l.b16 %v1182
    %v1331 = vunpack.c.h.b16 %v1182
    %v1332 = vunpack.c.l.b16 %v1183
    %v1333 = vunpack.c.h.b16 %v1183
    %v1334 = vunpack.c.l.b16 %v1184
    %v1335 = vunpack.c.h.b16 %v1184
    %v1336 = vunpack.c.l.b16 %v1185
    %v1337 = vunpack.c.h.b16 %v1185
    %v1338 = vunpack.c.l.b16 %v1186
    %v1339 = vunpack.c.h.b16 %v1186
    %v1340 = vunpack.c.l.b16 %v1187
    %v1341 = vunpack.c.h.b16 %v1187
    %v1342 = vunpack.c.l.b16 %v1188
    %v1343 = vunpack.c.h.b16 %v1188
    %v1344 = vunpack.c.l.b16 %v1189
    %v1345 = vunpack.c.h.b16 %v1189
    %v1346 = vunpack.c.l.b16 %v1190
    %v1347 = vunpack.c.h.b16 %v1190
    %v1348 = vunpack.c.l.b16 %v1191
    %v1349 = vunpack.c.h.b16 %v1191
    %v1350 = vunpack.c.l.b16 %v1192
    %v1351 = vunpack.c.h.b16 %v1192
    %v1352 = vunpack.c.l.b16 %v1193
    %v1353 = vunpack.c.h.b16 %v1193
    %v1354 = vunpack.c.l.b16 %v1194
    %v1355 = vunpack.c.h.b16 %v1194
    %v1356 = vunpack.c.l.b16 %v1195
    %v1357 = vunpack.c.h.b16 %v1195
    %v1358 = vunpack.c.l.b16 %v1196
    %v1359 = vunpack.c.h.b16 %v1196
    %v1360 = vunpack.c.l.b16 %v1197
    %v1361 = vunpack.c.h.b16 %v1197
    %v1362 = vunpack.c.l.b16 %v1198
    %v1363 = vunpack.c.h.b16 %v1198
    %v1364 = vunpack.c.l.b16 %v1199
    %v1365 = vunpack.c.h.b16 %v1199
    %v1366 = vunpack.c.l.b16 %v1200
    %v1367 = vunpack.c.h.b16 %v1200
    %v1368 = vunpack.c.l.b16 %v1201
    %v1369 = vunpack.c.h.b16 %v1201
    %v1370 = vunpack.c.l.b16 %v1202
    %v1371 = vunpack.c.h.b16 %v1202
    %v1372 = vunpack.c.l.b16 %v1203
    %v1373 = vunpack.c.h.b16 %v1203
    %v1374 = vunpack.c.l.b16 %v1204
    %v1375 = vunpack.c.h.b16 %v1204
    %v1376 = vunpack.c.l.b16 %v1205
    %v1377 = vunpack.c.h.b16 %v1205
    %v1378 = vunpack.c.l.b16 %v1206
    %v1379 = vunpack.c.h.b16 %v1206
    %v1380 = vunpack.c.l.b16 %v1207
    %v1381 = vunpack.c.h.b16 %v1207
    %v1382 = vunpack.c.l.b16 %v1208
    %v1383 = vunpack.c.h.b16 %v1208
    %v1384 = vunpack.c.l.b16 %v1209
    %v1385 = vunpack.c.h.b16 %v1209
    %v1386 = vunpack.c.l.b16 %v1210
    %v1387 = vunpack.c.h.b16 %v1210
    %v1388 = vunpack.c.l.b16 %v1211
    %v1389 = vunpack.c.h.b16 %v1211
    %v1390 = vunpack.c.l.b16 %v1212
    %v1391 = vunpack.c.h.b16 %v1212
    %v1392 = vunpack.c.l.b16 %v1213
    %v1393 = vunpack.c.h.b16 %v1213
    %v1394 = vunpack.c.l.b16 %v1214
    %v1395 = vunpack.c.h.b16 %v1214
    %v1396 = vunpack.c.l.b16 %v1215
    %v1397 = vunpack.c.h.b16 %v1215
    %v1398 = vunpack.c.l.b16 %v1216
    %v1399 = vunpack.c.h.b16 %v1216
    %v1400 = vunpack.c.l.b16 %v1217
    %v1401 = vunpack.c.h.b16 %v1217
    %v1402 = vunpack.c.l.b16 %v1218
    %v1403 = vunpack.c.h.b16 %v1218
    %v1404 = vunpack.c.l.b16 %v1219
    %v1405 = vunpack.c.h.b16 %v1219
    %v1406 = vunpack.c.l.b16 %v1220
    %v1407 = vunpack.c.h.b16 %v1220
    %v1408 = vunpack.c.l.b16 %v1221
    %v1409 = vunpack.c.h.b16 %v1221
    %v1410 = vunpack.c.l.b16 %v1222
    %v1411 = vunpack.c.h.b16 %v1222
    %v1412 = vunpack.c.l.b16 %v1223
    %v1413 = vunpack.c.h.b16 %v1223
    %v1414 = vunpack.c.l.b16 %v1224
    %v1415 = vunpack.c.h.b16 %v1224
    %v1416 = vunpack.c.l.b16 %v1225
    %v1417 = vunpack.c.h.b16 %v1225
    %v1418 = vunpack.c.l.b16 %v1226
    %v1419 = vunpack.c.h.b16 %v1226
    %v1420 = vunpack.c.l.b16 %v1227
    %v1421 = vunpack.c.h.b16 %v1227
    %v1422 = vunpack.c.l.b16 %v1228
    %v1423 = vunpack.c.h.b16 %v1228
    %v1424 = vunpack.c.l.b16 %v1229
    %v1425 = vunpack.c.h.b16 %v1229
    %v1426 = vunpack.c.l.b16 %v1230
    %v1427 = vunpack.c.h.b16 %v1230
    %v1428 = vunpack.c.l.b16 %v1231
    %v1429 = vunpack.c.h.b16 %v1231
    %v1430 = vunpack.c.l.b16 %v1232
    %v1431 = vunpack.c.h.b16 %v1232
    %v1432 = vunpack.c.l.b16 %v1233
    %v1433 = vunpack.c.h.b16 %v1233
    %v1434 = vunpack.c.l.b16 %v1234
    %v1435 = vunpack.c.h.b16 %v1234
    %v1436 = vunpack.c.l.b16 %v1235
    %v1437 = vunpack.c.h.b16 %v1235
    %v1438 = vunpack.c.l.b16 %v1236
    %v1439 = vunpack.c.h.b16 %v1236
    %v1440 = vunpack.c.l.b16 %v1237
    %v1441 = vunpack.c.h.b16 %v1237
    %v1442 = vpack.c.b16 %v1316, %v1314
    %v1443 = vpack.c.b16 %v1317, %v1315
    %v1444 = vpack.c.b16 %v1320, %v1318
    %v1445 = vpack.c.b16 %v1321, %v1319
    %v1446 = vpack.c.b16 %v1324, %v1322
    %v1447 = vpack.c.b16 %v1325, %v1323
    %v1448 = vpack.c.b16 %v1328, %v1326
    %v1449 = vpack.c.b16 %v1329, %v1327
    %v1450 = vpack.c.b16 %v1332, %v1330
    %v1451 = vpack.c.b16 %v1333, %v1331
    %v1452 = vpack.c.b16 %v1336, %v1334
    %v1453 = vpack.c.b16 %v1337, %v1335
    %v1454 = vpack.c.b16 %v1340, %v1338
    %v1455 = vpack.c.b16 %v1341, %v1339
    %v1456 = vpack.c.b16 %v1344, %v1342
    %v1457 = vpack.c.b16 %v1345, %v1343
    %v1458 = vpack.c.b16 %v1348, %v1346
    %v1459 = vpack.c.b16 %v1349, %v1347
    %v1460 = vpack.c.b16 %v1352, %v1350
    %v1461 = vpack.c.b16 %v1353, %v1351
    %v1462 = vpack.c.b16 %v1356, %v1354
    %v1463 = vpack.c.b16 %v1357, %v1355
    %v1464 = vpack.c.b16 %v1360, %v1358
    %v1465 = vpack.c.b16 %v1361, %v1359
    %v1466 = vpack.c.b16 %v1364, %v1362
    %v1467 = vpack.c.b16 %v1365, %v1363
    %v1468 = vpack.c.b16 %v1368, %v1366
    %v1469 = vpack.c.b16 %v1369, %v1367
    %v1470 = vpack.c.b16 %v1372, %v1370
    %v1471 = vpack.c.b16 %v1373, %v1371
    %v1472 = vpack.c.b16 %v1376, %v1374
    %v1473 = vpack.c.b16 %v1377, %v1375
    %v1474 = vpack.c.b16 %v1380, %v1378
    %v1475 = vpack.c.b16 %v1381, %v1379
    %v1476 = vpack.c.b16 %v1384, %v1382
    %v1477 = vpack.c.b16 %v1385, %v1383
    %v1478 = vpack.c.b16 %v1388, %v1386
    %v1479 = vpack.c.b16 %v1389, %v1387
    %v1480 = vpack.c.b16 %v1392, %v1390
    %v1481 = vpack.c.b16 %v1393, %v1391
    %v1482 = vpack.c.b16 %v1396, %v1394
    %v1483 = vpack.c.b16 %v1397, %v1395
    %v1484 = vpack.c.b16 %v1400, %v1398
    %v1485 = vpack.c.b16 %v1401, %v1399
    %v1486 = vpack.c.b16 %v1404, %v1402
    %v1487 = vpack.c.b16 %v1405, %v1403
    %v1488 = vpack.c.b16 %v1408, %v1406
    %v1489 = vpack.c.b16 %v1409, %v1407
    %v1490 = vpack.c.b16 %v1412, %v1410
    %v1491 = vpack.c.b16 %v1413, %v1411
    %v1492 = vpack.c.b16 %v1416, %v1414
    %v1493 = vpack.c.b16 %v1417, %v1415
    %v1494 = vpack.c.b16 %v1420, %v1418
    %v1495 = vpack.c.b16 %v1421, %v1419
    %v1496 = vpack.c.b16 %v1424, %v1422
    %v1497 = vpack.c.b16 %v1425, %v1423
    %v1498 = vpack.c.b16 %v1428, %v1426
    %v1499 = vpack.c.b16 %v1429, %v1427
    %v1500 = vpack.c.b16 %v1432, %v1430
    %v1501 = vpack.c.b16 %v1433, %v1431
    %v1502 = vpack.c.b16 %v1436, %v1434
    %v1503 = vpack.c.b16 %v1437, %v1435
    %v1504 = vpack.c.b16 %v1440, %v1438
    %v1505 = vpack.c.b16 %v1441, %v1439
    %1570 = vmatprep.subr.bf16.mxu0 %v1457
    %1571 = vmatpush1.bf16.msra.mxu0 %v1456
    %1572 = vmatprep.subr.bf16.mxu0 %v1455
    %1573 = vmatpush1.bf16.msra.mxu0 %v1454
    %1574 = vmatprep.subr.bf16.mxu0 %v1453
    %1575 = vmatpush1.bf16.msra.mxu0 %v1452
    %1576 = vmatprep.subr.bf16.mxu0 %v1451
    %1577 = vmatpush1.bf16.msra.mxu0 %v1450
    %1578 = vmatprep.subr.bf16.mxu0 %v1449
    %1579 = vmatpush1.bf16.msra.mxu0 %v1448
    %1580 = vmatprep.subr.bf16.mxu0 %v1447
    %1581 = vmatpush1.bf16.msra.mxu0 %v1446
    %1582 = vmatprep.subr.bf16.mxu0 %v1445
    %1583 = vmatpush1.bf16.msra.mxu0 %v1444
    %1584 = vmatprep.subr.bf16.mxu0 %v1443
    %1585 = vmatpush1.bf16.msra.mxu0 %v1442
    %1586 = vmatprep.subr.bf16.mxu0 %v1473
    %1587 = vmatpush2.bf16.msra.mxu0 %v1472
    %1588 = vmatprep.subr.bf16.mxu0 %v1471
    %1589 = vmatpush2.bf16.msra.mxu0 %v1470
    %1590 = vmatprep.subr.bf16.mxu0 %v1469
    %1591 = vmatpush2.bf16.msra.mxu0 %v1468
    %1592 = vmatprep.subr.bf16.mxu0 %v1467
    %1593 = vmatpush2.bf16.msra.mxu0 %v1466
    %1594 = vmatprep.subr.bf16.mxu0 %v1465
    %1595 = vmatpush2.bf16.msra.mxu0 %v1464
    %1596 = vmatprep.subr.bf16.mxu0 %v1463
    %1597 = vmatpush2.bf16.msra.mxu0 %v1462
    %1598 = vmatprep.subr.bf16.mxu0 %v1461
    %1599 = vmatpush2.bf16.msra.mxu0 %v1460
    %1600 = vmatprep.subr.bf16.mxu0 %v1459
    %1601 = vmatpush2.bf16.msra.mxu0 %v1458
    %1602 = vmatprep.mubr.bf16.mxu0 %v1171
    %1603 = vmatmul.mubr.bf16.gmra.mxu0 %v1170
    %v1604 = vpop.f32.mrf.mxu0
    %v1605 = vadd.f32 %v1243, %v1604
    %v1606 = vpop.f32.mrf.mxu0
    %v1607 = vadd.f32 %v1247, %v1606
    %v1608 = vpop.f32.mrf.mxu0
    %v1609 = vpop.f32.mrf.mxu0
    %1610 = vdwg.mxu0
    %1611 = vmatprep.subr.bf16.mxu0 %v1489
    %1612 = vmatpush1.bf16.msra.mxu0 %v1488
    %1613 = vmatprep.subr.bf16.mxu0 %v1487
    %1614 = vmatpush1.bf16.msra.mxu0 %v1486
    %1615 = vmatprep.subr.bf16.mxu0 %v1485
    %1616 = vmatpush1.bf16.msra.mxu0 %v1484
    %1617 = vmatprep.subr.bf16.mxu0 %v1483
    %1618 = vmatpush1.bf16.msra.mxu0 %v1482
    %1619 = vmatprep.subr.bf16.mxu0 %v1481
    %1620 = vmatpush1.bf16.msra.mxu0 %v1480
    %1621 = vmatprep.subr.bf16.mxu0 %v1479
    %1622 = vmatpush1.bf16.msra.mxu0 %v1478
    %1623 = vmatprep.subr.bf16.mxu0 %v1477
    %1624 = vmatpush1.bf16.msra.mxu0 %v1476
    %1625 = vmatprep.subr.bf16.mxu0 %v1475
    %1626 = vmatpush1.bf16.msra.mxu0 %v1474
    %1627 = vmatprep.subr.bf16.mxu0 %v1505
    %1628 = vmatpush2.bf16.msra.mxu0 %v1504
    %1629 = vmatprep.subr.bf16.mxu0 %v1503
    %1630 = vmatpush2.bf16.msra.mxu0 %v1502
    %1631 = vmatprep.subr.bf16.mxu0 %v1501
    %1632 = vmatpush2.bf16.msra.mxu0 %v1500
    %1633 = vmatprep.subr.bf16.mxu0 %v1499
    %1634 = vmatpush2.bf16.msra.mxu0 %v1498
    %1635 = vmatprep.subr.bf16.mxu0 %v1497
    %1636 = vmatpush2.bf16.msra.mxu0 %v1496
    %1637 = vmatprep.subr.bf16.mxu0 %v1495
    %1638 = vmatpush2.bf16.msra.mxu0 %v1494
    %1639 = vmatprep.subr.bf16.mxu0 %v1493
    %1640 = vmatpush2.bf16.msra.mxu0 %v1492
    %1641 = vmatprep.subr.bf16.mxu0 %v1491
    %1642 = vmatpush2.bf16.msra.mxu0 %v1490
    %1643 = vmatprep.mubr.bf16.mxu0 %v1173
    %1644 = vmatmul.mubr.bf16.gmra.mxu0 %v1172
    %v1645 = vpop.f32.mrf.mxu0
    %v1646 = vadd.f32 %v1605, %v1645
    %v1647 = vpop.f32.mrf.mxu0
    %v1648 = vadd.f32 %v1607, %v1647
    %v1649 = vpop.f32.mrf.mxu0
    %v1650 = vpop.f32.mrf.mxu0
    %1651 = vdwg.mxu0
    %v1652 = vmax.f32 %v1646, 0.0
    %v1653 = vmax.f32 %v1648, 0.0
    %v1654 = vpack.c.bf16 %v1652, %v1652
    %v1655 = vpack.c.bf16 %v1653, %v1653
    %v1656 = vld [vmem:[#allocation10] sm:$0xf]
    %v1657 = vld [vmem:[#allocation10 + $0x4] sm:$0xf]
    %v1658 = vld [vmem:[#allocation10 + $0x8] sm:$0xf]
    %v1659 = vld [vmem:[#allocation10 + $0xc] sm:$0xf]
    %v1660 = vld [vmem:[#allocation10 + $0x10] sm:$0xf]
    %v1661 = vld [vmem:[#allocation10 + $0x14] sm:$0xf]
    %v1662 = vld [vmem:[#allocation10 + $0x18] sm:$0xf]
    %v1663 = vld [vmem:[#allocation10 + $0x1c] sm:$0xf]
    %v1664 = vld [vmem:[#allocation10 + $0x20] sm:$0xf]
    %v1665 = vld [vmem:[#allocation10 + $0x24] sm:$0xf]
    %v1666 = vld [vmem:[#allocation10 + $0x28] sm:$0xf]
    %v1667 = vld [vmem:[#allocation10 + $0x2c] sm:$0xf]
    %v1668 = vld [vmem:[#allocation10 + $0x30] sm:$0xf]
    %v1669 = vld [vmem:[#allocation10 + $0x34] sm:$0xf]
    %v1670 = vld [vmem:[#allocation10 + $0x38] sm:$0xf]
    %v1671 = vld [vmem:[#allocation10 + $0x3c] sm:$0xf]
    %v1672 = vld [vmem:[#allocation10 + $0x40] sm:$0xf]
    %v1673 = vld [vmem:[#allocation10 + $0x44] sm:$0xf]
    %v1674 = vld [vmem:[#allocation10 + $0x48] sm:$0xf]
    %v1675 = vld [vmem:[#allocation10 + $0x4c] sm:$0xf]
    %v1676 = vld [vmem:[#allocation10 + $0x50] sm:$0xf]
    %v1677 = vld [vmem:[#allocation10 + $0x54] sm:$0xf]
    %v1678 = vld [vmem:[#allocation10 + $0x58] sm:$0xf]
    %v1679 = vld [vmem:[#allocation10 + $0x5c] sm:$0xf]
    %v1680 = vld [vmem:[#allocation10 + $0x60] sm:$0xf]
    %v1681 = vld [vmem:[#allocation10 + $0x64] sm:$0xf]
    %v1682 = vld [vmem:[#allocation10 + $0x68] sm:$0xf]
    %v1683 = vld [vmem:[#allocation10 + $0x6c] sm:$0xf]
    %v1684 = vld [vmem:[#allocation10 + $0x70] sm:$0xf]
    %v1685 = vld [vmem:[#allocation10 + $0x74] sm:$0xf]
    %v1686 = vld [vmem:[#allocation10 + $0x78] sm:$0xf]
    %v1687 = vld [vmem:[#allocation10 + $0x7c] sm:$0xf]
    %v1688 = vld [vmem:[%s10] sm:$0x1]
    %v1690 = vlaneseq
    %v1691 = vshrl.u32 %v1690, 7
    %v1692 = vsub.s32 0, %v1691
    %v1693 = vrot.slane %v1688, %v1692
    %v1727 = vunpack.c.l.b16 %v1656
    %v1728 = vunpack.c.l.b16 %v1657
    %v1729 = vunpack.c.l.b16 %v1658
    %v1730 = vunpack.c.l.b16 %v1659
    %v1731 = vunpack.c.l.b16 %v1660
    %v1732 = vunpack.c.l.b16 %v1661
    %v1733 = vunpack.c.l.b16 %v1662
    %v1734 = vunpack.c.l.b16 %v1663
    %v1735 = vunpack.c.l.b16 %v1664
    %v1736 = vunpack.c.l.b16 %v1665
    %v1737 = vunpack.c.l.b16 %v1666
    %v1738 = vunpack.c.l.b16 %v1667
    %v1739 = vunpack.c.l.b16 %v1668
    %v1740 = vunpack.c.l.b16 %v1669
    %v1741 = vunpack.c.l.b16 %v1670
    %v1742 = vunpack.c.l.b16 %v1671
    %v1743 = vunpack.c.l.b16 %v1672
    %v1744 = vunpack.c.l.b16 %v1673
    %v1745 = vunpack.c.l.b16 %v1674
    %v1746 = vunpack.c.l.b16 %v1675
    %v1747 = vunpack.c.l.b16 %v1676
    %v1748 = vunpack.c.l.b16 %v1677
    %v1749 = vunpack.c.l.b16 %v1678
    %v1750 = vunpack.c.l.b16 %v1679
    %v1751 = vunpack.c.l.b16 %v1680
    %v1752 = vunpack.c.l.b16 %v1681
    %v1753 = vunpack.c.l.b16 %v1682
    %v1754 = vunpack.c.l.b16 %v1683
    %v1755 = vunpack.c.l.b16 %v1684
    %v1756 = vunpack.c.l.b16 %v1685
    %v1757 = vunpack.c.l.b16 %v1686
    %v1758 = vunpack.c.l.b16 %v1687
    %v1759 = vpack.c.b16 %v1728, %v1727
    %v1760 = vpack.c.b16 %v1730, %v1729
    %v1761 = vpack.c.b16 %v1732, %v1731
    %v1762 = vpack.c.b16 %v1734, %v1733
    %v1763 = vpack.c.b16 %v1736, %v1735
    %v1764 = vpack.c.b16 %v1738, %v1737
    %v1765 = vpack.c.b16 %v1740, %v1739
    %v1766 = vpack.c.b16 %v1742, %v1741
    %v1767 = vpack.c.b16 %v1744, %v1743
    %v1768 = vpack.c.b16 %v1746, %v1745
    %v1769 = vpack.c.b16 %v1748, %v1747
    %v1770 = vpack.c.b16 %v1750, %v1749
    %v1771 = vpack.c.b16 %v1752, %v1751
    %v1772 = vpack.c.b16 %v1754, %v1753
    %v1773 = vpack.c.b16 %v1756, %v1755
    %v1774 = vpack.c.b16 %v1758, %v1757
    %1791 = vmatprep.subr.bf16.mxu0 0
    %1792 = vmatpush1.bf16.msra.mxu0 %v1766
    %1793 = vmatprep.subr.bf16.mxu0 0
    %1794 = vmatpush1.bf16.msra.mxu0 %v1765
    %1795 = vmatprep.subr.bf16.mxu0 0
    %1796 = vmatpush1.bf16.msra.mxu0 %v1764
    %1797 = vmatprep.subr.bf16.mxu0 0
    %1798 = vmatpush1.bf16.msra.mxu0 %v1763
    %1799 = vmatprep.subr.bf16.mxu0 0
    %1800 = vmatpush1.bf16.msra.mxu0 %v1762
    %1801 = vmatprep.subr.bf16.mxu0 0
    %1802 = vmatpush1.bf16.msra.mxu0 %v1761
    %1803 = vmatprep.subr.bf16.mxu0 0
    %1804 = vmatpush1.bf16.msra.mxu0 %v1760
    %1805 = vmatprep.subr.bf16.mxu0 0
    %1806 = vmatpush1.bf16.msra.mxu0 %v1759
    %1807 = vmatprep.subr.bf16.mxu0 0
    %1808 = vmatpush2.bf16.msra.mxu0 %v1774
    %1809 = vmatprep.subr.bf16.mxu0 0
    %1810 = vmatpush2.bf16.msra.mxu0 %v1773
    %1811 = vmatprep.subr.bf16.mxu0 0
    %1812 = vmatpush2.bf16.msra.mxu0 %v1772
    %1813 = vmatprep.subr.bf16.mxu0 0
    %1814 = vmatpush2.bf16.msra.mxu0 %v1771
    %1815 = vmatprep.subr.bf16.mxu0 0
    %1816 = vmatpush2.bf16.msra.mxu0 %v1770
    %1817 = vmatprep.subr.bf16.mxu0 0
    %1818 = vmatpush2.bf16.msra.mxu0 %v1769
    %1819 = vmatprep.subr.bf16.mxu0 0
    %1820 = vmatpush2.bf16.msra.mxu0 %v1768
    %1821 = vmatprep.subr.bf16.mxu0 0
    %1822 = vmatpush2.bf16.msra.mxu0 %v1767
    %1823 = vmatprep.mubr.bf16.mxu0 %v1655
    %1824 = vmatmul.mubr.bf16.gmra.mxu0 %v1654
    %v1825 = vpop.f32.mrf.mxu0
    %v1826 = vadd.f32 %v1693, %v1825
    %v1827 = vpop.f32.mrf.mxu0
    %v1828 = vpop.f32.mrf.mxu0
    %v1829 = vpop.f32.mrf.mxu0
    %1830 = vdwg.mxu0
    %1831 = vst [vmem:[#allocation11] sm:$0x3] %v1826
    // Predicated region
    $region66: #{_lambda_.1} parent=1 // pred_check
      _
    $region67: #{_lambda_.1} parent=1 // pred_check_branch
      %1833 = sbr.rel (0) target = $region69
    $region68: #{_lambda_.1} parent=1 // pred_region
      %s1835 = ssub.s32 32, 32
      %1836 = vsyncadd [#allocation4], %s1835
      %s1838 = sshll.u32 [#allocation11], 4
      %s1839 = int_to_ptr.vmem [resolvable:$true] %s1838
      %1841 = dma.vmem_to_hbm [thread:$0]  %s1839, 32, %s11, [#allocation4]
    $region69: #{_lambda_.1} parent=1 // pred_fallthru
      _
    // Predicated region
    $region70: #{_lambda_.1} parent=1 // pred_check
      _
    $region71: #{_lambda_.1} parent=1 // pred_check_branch
      %1843 = sbr.rel (0) target = $region73
    $region72: #{_lambda_.1} parent=1 // pred_region
      %1844 = dma.done [#allocation4], 32
    $region73: #{_lambda_.1} parent=1 // pred_fallthru
      _
    %1845 = vsyncpa [#allocation3], 1
    %1846 = vsyncpa [#allocation6], 1
    %1847 = vsyncpa [#allocation9], 1
    %1848 = vsyncpa [#allocation4], 1

</llo_original>
